<compile_context>
chip_gen: v7x
topology: tpu7x:2x2x1
jax: 0.10.0
libtpu: 0.0.40
codegen_flags: <defaults>
</compile_context>

<pallas_src>
import functools

import jax
import jax.numpy as jnp
from jax.experimental import pallas as pl
from jax.experimental.pallas import tpu as pltpu


# ----------------------------------------------------------------------------- kernel
def _sconv1_kernel(
    v_ref, e_ref, s_ref, m_ref, mt_ref, msrc_ref, mdstT_ref,
    w_in_ref, w_mid_ref, expand_ref, b_ref,
    vv_ref, ss_ref,
    *, k_head, h_dim):
    H, K = h_dim, k_head
    KH = K * H
    f32 = jnp.float32

    def dot(a, b):
        return jnp.dot(a, b, preferred_element_type=f32)

    def leaky(x):                      # F.leaky_relu(..., 0.1)
        return jnp.where(x > 0, x, 0.1 * x)

    # ------------- static lane offsets into the packed operands (zero-cost views)
    oV, wV = 0, 2 * KH + 4 * H                     # v-pack : Haw | Hdw | Ew2 | gm_wi
    oS, wS = oV + wV, KH + 5 * H                   # s-pack : Aw  | Hbw | Cw  | gs_wi
    oKw = oS + wS                                  # misc weights (all H rows)
    oEw1 = oKw + H
    o_gm_aw = oEw1 + H
    o_gm_bw = o_gm_aw + H
    o_gm_wh = o_gm_bw + H
    o_gs_aw = o_gm_wh + 3 * H
    o_gs_bw = o_gs_aw + H
    o_gs_wh = o_gs_bw + H
    # bias layout: [Bv | Bs | Kb | Bb | Hcb | gm_ab | gm_bb | gm_bh | gs_ab | gs_bb | gs_bh]
    bKb = oS + wS
    bBb = bKb + H
    bHcb = bBb + H
    b_gm_ab = bHcb + K
    b_gm_bb = b_gm_ab + H
    b_gm_bh = b_gm_bb + H
    b_gs_ab = b_gm_bh + 3 * H
    b_gs_bb = b_gs_ab + H
    b_gs_bh = b_gs_bb + H

    v = v_ref[...]
    e = e_ref[...]
    s = s_ref[...]
    M = m_ref[...]          # [G, N] bf16 (exact once promoted to f32 in the dots)
    Mt = mt_ref[...]        # [N, G]
    Msrc = msrc_ref[...]    # [E, N]
    MdstT = mdstT_ref[...]  # [N, E]

    # ------------- 1) everything whose LHS is v: one lane-dense [H, 2KH+4H] matmul
    v_out = dot(v, w_in_ref[:, oV:oV + wV]) + b_ref[:, oV:oV + wV]        # [N, wV]
    d_node = jnp.tanh(v_out[:, 0:KH])                # helper A_k(v), all heads packed
    h_heads = v_out[:, KH:2 * KH]                    # helper D_k(v), all heads packed
    vEw2 = v_out[:, 2 * KH:2 * KH + H]               # v @ Ew2 + Eb (E's v-half + bias)
    gi_m = v_out[:, 2 * KH + H:wV]                   # GRU input gates (r|z|n) for main

    # ------------- 2) everything whose LHS is s: one [H, KH+5H] matmul
    s_out = dot(s, w_in_ref[:, oS:oS + wS]) + b_ref[:, oS:oS + wS]        # [G, wS]
    s2s = jnp.tanh(s_out[:, 0:H])                    # tanh(A(s))
    ds_sm_g = jnp.tanh(s_out[:, H:2 * H + KH])       # [d_sup_g | s2m_g] (adjacent lanes)
    gi_s = s_out[:, 2 * H + KH:wS]                   # GRU input gates for super

    # ------------- 3) one fused broadcast_nodes for both tensors
    bcast = dot(Mt, ds_sm_g)                         # [N, KH+H]
    d_sup = bcast[:, 0:KH]
    s2m = bcast[:, KH:KH + H]

    # ------------- 4) helper attention: per-graph softmax over nodes (K heads packed)
    logits = dot(d_node * d_sup, w_mid_ref[:, H:H + K]) + b_ref[:, bHcb:bHcb + K]  # [N, K]
    # Per-graph shift (softmax is shift invariant).  Using the per-graph MEAN keeps
    # everything as plain M/Mt matmuls and guarantees denominator >= n_nodes >= 1,
    # so no cross-graph underflow of the kind a single global max shift could cause.
    cnt_g = jnp.sum(M.astype(f32), axis=1, keepdims=True)                 # [G, 1]
    shift = dot(Mt, dot(M, logits) / cnt_g)                               # [N, K]
    ea = jnp.exp(logits - shift)                                          # [N, K]
    den_n = dot(Mt, dot(M, ea))                                           # per-graph sums
    p = ea / den_n                                                        # exact division
    p_full = dot(p, expand_ref[...])                 # repeat head weight over its H lanes
    m2s_heads = dot(M, h_heads * p_full)             # sum_nodes -> [G, KH]
    m2s = jnp.tanh(dot(m2s_heads, w_mid_ref[:, 0:H]) + b_ref[:, bBb:bBb + H])  # B(...)

    # ------------- 5) edge aggregation: sum_e leaky(K(e) * v_src) into dst nodes
    ke = dot(e, w_in_ref[:, oKw:oKw + H]) + b_ref[:, bKb:bKb + H]         # [E, H]
    v_src = dot(Msrc, v)                                                  # gather src
    sve = dot(MdstT, leaky(ke * v_src))                                   # scatter-add
    m2m = leaky(dot(sve, w_in_ref[:, oEw1:oEw1 + H]) + vEw2)              # E(sve||v)

    # ------------- 6) gate update (z-gate + GRUCell; input gates already in packs 1/2)
    def gate(a, b, gi, o_aw, o_bw, o_wh, b_ab, b_bb, b_bh):
        z = jax.nn.sigmoid(
            dot(a, w_in_ref[:, o_aw:o_aw + H]) + b_ref[:, b_ab:b_ab + H]
            + dot(b, w_in_ref[:, o_bw:o_bw + H]) + b_ref[:, b_bb:b_bb + H])
        h = z * b + (1.0 - z) * a
        gh = dot(h, w_in_ref[:, o_wh:o_wh + 3 * H]) + b_ref[:, b_bh:b_bh + 3 * H]
        r = jax.nn.sigmoid(gi[:, 0:H] + gh[:, 0:H])
        zz = jax.nn.sigmoid(gi[:, H:2 * H] + gh[:, H:2 * H])
        n = jnp.tanh(gi[:, 2 * H:3 * H] + r * gh[:, 2 * H:3 * H])
        return (1.0 - zz) * n + zz * h

    vv_ref[...] = gate(m2m, s2m, gi_m, o_gm_aw, o_gm_bw, o_gm_wh,
                       b_gm_ab, b_gm_bb, b_gm_bh)
    ss_ref[...] = gate(s2s, m2s, gi_s, o_gs_aw, o_gs_bw, o_gs_wh,
                       b_gs_ab, b_gs_bb, b_gs_bh)


# ----------------------------------------------------------------------------- wrapper
def sconv1_forward(packed, v, e_pad, s, M, Mt, Msrc, MdstT, *, k_head, h_dim):
    n, g, e_rows = v.shape[0], s.shape[0], e_pad.shape[0]
    KH = k_head * h_dim
    wV, wS = 2 * KH + 4 * h_dim, KH + 5 * h_dim

    args = (v, e_pad, s, M, Mt, Msrc, MdstT,
            packed["W_in"], packed["W_mid"], packed["Expand"], packed["Bias"])
    vmem = pl.BlockSpec(memory_space=pltpu.MemorySpace.VMEM)

    bytes_accessed = sum(int(a.size) * a.dtype.itemsize for a in args) \
        + (n + g) * h_dim * 4
    flops = 2 * (n * wV * h_dim + g * wS * h_dim          # v-pack, s-pack
                 + n * g * (KH + h_dim)                   # fused broadcast_nodes
                 + n * KH * k_head + n * k_head * KH      # logits + expand
                 + 4 * g * n * k_head + g * n * KH        # softmax matmuls + sum_nodes
                 + g * KH * h_dim                         # B
                 + e_rows * h_dim * h_dim + 2 * e_rows * n * h_dim  # K(e), gather, scatter
                 + n * h_dim * h_dim                      # sve @ Ew1
                 + (n + g) * 5 * h_dim * h_dim)           # gate z / GRU hidden matmuls
    transcendentals = (n + g) * h_dim * 12 + n * k_head * 2

    kern = functools.partial(_sconv1_kernel, k_head=k_head, h_dim=h_dim)
    return pl.pallas_call(
        kern,
        out_shape=(jax.ShapeDtypeStruct((n, h_dim), jnp.float32),
                   jax.ShapeDtypeStruct((g, h_dim), jnp.float32)),
        in_specs=[vmem] * len(args),
        out_specs=(vmem, vmem),
        compiler_params=pltpu.CompilerParams(vmem_limit_bytes=32 * 1024 * 1024),
        cost_estimate=pl.CostEstimate(flops=int(flops),
                                      transcendentals=int(transcendentals),
                                      bytes_accessed=int(bytes_accessed)),
    )(*args)


# ----------------------------------------------------------------------------- params
def _init_linear(key, fan_in, fan_out):
    kw, kb = jax.random.split(key)
    lim = 1.0 / (fan_in ** 0.5)
    w = jax.random.uniform(kw, (fan_in, fan_out), jnp.float32, -lim, lim)  # stored [in, out]
    b = jax.random.uniform(kb, (1, fan_out), jnp.float32, -lim, lim)
    return w, b


def _init_gru(key, in_dim, h_dim):
    ks = jax.random.split(key, 12)
    lim = 1.0 / (h_dim ** 0.5)
    u = lambda k, shp: jax.random.uniform(k, shp, jnp.float32, -lim, lim)
    return dict(
        wir=u(ks[0], (in_dim, h_dim)), wiz=u(ks[1], (in_dim, h_dim)), win=u(ks[2], (in_dim, h_dim)),
        whr=u(ks[3], (h_dim, h_dim)), whz=u(ks[4], (h_dim, h_dim)), whn=u(ks[5], (h_dim, h_dim)),
        bir=u(ks[6], (1, h_dim)), biz=u(ks[7], (1, h_dim)), bin=u(ks[8], (1, h_dim)),
        bhr=u(ks[9], (1, h_dim)), bhz=u(ks[10], (1, h_dim)), bhn=u(ks[11], (1, h_dim)),
    )


def _init_gate(key, h_dim):
    ka, kb, kg = jax.random.split(key, 3)
    aw, ab = _init_linear(ka, h_dim, h_dim)
    bw, bb = _init_linear(kb, h_dim, h_dim)
    return dict(aw=aw, ab=ab, bw=bw, bb=bb, **_init_gru(kg, h_dim, h_dim))


def _init_helper(key, v_dim, h_dim):
    ka, kb, kc, kd = jax.random.split(key, 4)
    return dict(a=_init_linear(ka, v_dim, h_dim), b=_init_linear(kb, v_dim, h_dim),
                c=_init_linear(kc, h_dim, 1), d=_init_linear(kd, v_dim, h_dim))


def init_params(key, v_dim, e_dim, h_dim, k_head):
    keys = jax.random.split(key, 8 + k_head)
    return {
        "A": _init_linear(keys[0], v_dim, h_dim),
        "B": _init_linear(keys[1], h_dim * k_head, h_dim),
        "C": _init_linear(keys[2], v_dim, h_dim),
        "D": _init_linear(keys[3], e_dim + v_dim, h_dim),   # constructed but unused (matches PyTorch)
        "E": _init_linear(keys[4], h_dim + v_dim, h_dim),
        "K": _init_linear(keys[5], e_dim, h_dim),
        "gate_m": _init_gate(keys[6], h_dim),
        "gate_s": _init_gate(keys[7], h_dim),
        "m2s": [_init_helper(keys[8 + k], v_dim, h_dim) for k in range(k_head)],
    }


def pack_params(params, *, v_dim, e_dim, h_dim, k_head):
    """Collapse all weights/biases into 4 packed operands (W_in, W_mid, Expand, Bias)."""
    assert v_dim == h_dim, "GRUCell(v) and K(e)*v require v_dim == h_dim"
    assert e_dim <= h_dim, "K's weight is zero-row-padded into the shared H-row pack"
    H, K = h_dim, k_head
    KH = K * H
    heads = params["m2s"]
    cat = lambda xs: jnp.concatenate(xs, axis=1)

    Haw = cat([h["a"][0] for h in heads]); Hab = cat([h["a"][1] for h in heads])
    Hbw = cat([h["b"][0] for h in heads]); Hbb = cat([h["b"][1] for h in heads])
    Hdw = cat([h["d"][0] for h in heads]); Hdb = cat([h["d"][1] for h in heads])
    # Block-diagonal C: head k's [H,1] column lives in rows k*H:(k+1)*H, column k.
    Hcw = jnp.zeros((KH, K), jnp.float32)
    for k in range(K):
        Hcw = Hcw.at[k * H:(k + 1) * H, k].set(heads[k]["c"][0][:, 0])
    Hcb = cat([h["c"][1] for h in heads])                                 # [1, K]

    Ew, Eb = params["E"]
    Ew1, Ew2 = Ew[:H], Ew[H:]                       # concat((sve, v)) order
    Kw, Kb = params["K"]
    Kw_pad = jnp.zeros((H, H), jnp.float32).at[:e_dim].set(Kw)

    def gru_pack(g):
        return (cat([g["wir"], g["wiz"], g["win"]]), cat([g["bir"], g["biz"], g["bin"]]),
                cat([g["whr"], g["whz"], g["whn"]]), cat([g["bhr"], g["bhz"], g["bhn"]]))

    gm, gs = params["gate_m"], params["gate_s"]
    gm_wi, gm_bi, gm_wh, gm_bh = gru_pack(gm)
    gs_wi, gs_bi, gs_wh, gs_bh = gru_pack(gs)
    Aw, Ab = params["A"]; Bw, Bb = params["B"]; Cw, Cb = params["C"]

    W_in = jnp.concatenate(
        [Haw, Hdw, Ew2, gm_wi,                       # v-pack  [*, 2KH+4H]
         Aw, Hbw, Cw, gs_wi,                         # s-pack  [*, KH+5H]
         Kw_pad, Ew1, gm["aw"], gm["bw"], gm_wh, gs["aw"], gs["bw"], gs_wh],
        axis=1)                                      # [H, 3KH + 21H]
    W_mid = jnp.concatenate([Bw, Hcw], axis=1)       # [KH, H + K]
    Bias = jnp.concatenate(
        [Hab, Hdb, Eb, gm_bi,
         Ab, Hbb, Cb, gs_bi,
         Kb, Bb, Hcb, gm["ab"], gm["bb"], gm_bh, gs["ab"], gs["bb"], gs_bh],
        axis=1)                                      # [1, 3KH + 21H + K]
    Expand = jnp.zeros((K, KH), jnp.float32)         # host-side per-head expand one-hot
    for k in range(K):
        Expand = Expand.at[k, k * H:(k + 1) * H].set(1.0)
    return dict(W_in=W_in, W_mid=W_mid, Expand=Expand, Bias=Bias)


# ----------------------------------------------------------------------------- main
if __name__ == "__main__":
    V_DIM = H_DIM = 32     # GRUCell(h_dim, h_dim) consumes v directly -> v_dim must equal h_dim
    E_DIM = 16
    K_HEAD = 2

    # Small batched graph: 2 graphs, 5 + 3 nodes, 9 directed edges.
    node2graph = jnp.array([0, 0, 0, 0, 0, 1, 1, 1], jnp.int32)
    src = jnp.array([0, 1, 2, 3, 4, 1, 5, 6, 7], jnp.int32)
    dst = jnp.array([1, 2, 3, 4, 0, 3, 6, 7, 5], jnp.int32)
    N, G, E = int(node2graph.shape[0]), 2, int(src.shape[0])

    # Structural one-hot matrices in bf16 (exact for 0/1 after promotion; halves DMA bytes).
    Mt = jax.nn.one_hot(node2graph, G, dtype=jnp.bfloat16)          # [N, G]
    M = Mt.T                                                        # [G, N]
    Msrc = jax.nn.one_hot(src, N, dtype=jnp.bfloat16)               # [E, N]
    MdstT = jax.nn.one_hot(dst, N, dtype=jnp.bfloat16).T            # [N, E]

    key = jax.random.PRNGKey(0)
    k_feat, k_par = jax.random.split(key)
    kv, ke, ks = jax.random.split(k_feat, 3)
    v = jax.random.normal(kv, (N, V_DIM), jnp.float32)
    e = jax.random.normal(ke, (E, E_DIM), jnp.float32)
    s = jax.random.normal(ks, (G, V_DIM), jnp.float32)
    # Zero-pad edge features so K's weight joins the shared H-row weight pack.
    e_pad = jnp.pad(e, ((0, 0), (0, H_DIM - E_DIM)))

    params = init_params(k_par, V_DIM, E_DIM, H_DIM, K_HEAD)
    packed = pack_params(params, v_dim=V_DIM, e_dim=E_DIM, h_dim=H_DIM, k_head=K_HEAD)

    fwd = jax.jit(functools.partial(sconv1_forward, k_head=K_HEAD, h_dim=H_DIM))
    vv, ss = fwd(packed, v, e_pad, s, M, Mt, Msrc, MdstT)
    jax.block_until_ready((vv, ss))

    assert vv.shape == (N, H_DIM) and ss.shape == (G, H_DIM)
    assert bool(jnp.all(jnp.isfinite(vv))) and bool(jnp.all(jnp.isfinite(ss)))
    print("KERNEL_OK")
</pallas_src>

<mosaic_0001>
module attributes {stable_mosaic.version = 11 : i64} {
  func.func @_sconv1_kernel(%arg0: memref<8x32xf32, #tpu.memory_space<vmem>>, %arg1: memref<9x32xf32, #tpu.memory_space<vmem>>, %arg2: memref<2x32xf32, #tpu.memory_space<vmem>>, %arg3: memref<2x8xbf16, #tpu.memory_space<vmem>>, %arg4: memref<8x2xbf16, #tpu.memory_space<vmem>>, %arg5: memref<9x8xbf16, #tpu.memory_space<vmem>>, %arg6: memref<8x9xbf16, #tpu.memory_space<vmem>>, %arg7: memref<32x864xf32, #tpu.memory_space<vmem>>, %arg8: memref<64x34xf32, #tpu.memory_space<vmem>>, %arg9: memref<2x64xf32, #tpu.memory_space<vmem>>, %arg10: memref<1x866xf32, #tpu.memory_space<vmem>>, %arg11: memref<8x32xf32, #tpu.memory_space<vmem>>, %arg12: memref<2x32xf32, #tpu.memory_space<vmem>>) attributes {dimension_semantics = [], scalar_prefetch = 0 : i64, scratch_operands = 0 : i64, tpu.core_type = #tpu.core_type<tc>} {
    %c0 = arith.constant 0 : index
    %c0_0 = arith.constant 0 : index
    %0 = vector.load %arg0[%c0, %c0_0] : memref<8x32xf32, #tpu.memory_space<vmem>>, vector<8x32xf32>
    %c0_1 = arith.constant 0 : index
    %c0_2 = arith.constant 0 : index
    %1 = vector.load %arg1[%c0_1, %c0_2] : memref<9x32xf32, #tpu.memory_space<vmem>>, vector<9x32xf32>
    %c0_3 = arith.constant 0 : index
    %c0_4 = arith.constant 0 : index
    %2 = vector.load %arg2[%c0_3, %c0_4] : memref<2x32xf32, #tpu.memory_space<vmem>>, vector<2x32xf32>
    %c0_5 = arith.constant 0 : index
    %c0_6 = arith.constant 0 : index
    %3 = vector.load %arg3[%c0_5, %c0_6] : memref<2x8xbf16, #tpu.memory_space<vmem>>, vector<2x8xbf16>
    %c0_7 = arith.constant 0 : index
    %c0_8 = arith.constant 0 : index
    %4 = vector.load %arg4[%c0_7, %c0_8] : memref<8x2xbf16, #tpu.memory_space<vmem>>, vector<8x2xbf16>
    %c0_9 = arith.constant 0 : index
    %c0_10 = arith.constant 0 : index
    %5 = vector.load %arg5[%c0_9, %c0_10] : memref<9x8xbf16, #tpu.memory_space<vmem>>, vector<9x8xbf16>
    %c0_11 = arith.constant 0 : index
    %c0_12 = arith.constant 0 : index
    %6 = vector.load %arg6[%c0_11, %c0_12] : memref<8x9xbf16, #tpu.memory_space<vmem>>, vector<8x9xbf16>
    %c0_13 = arith.constant 0 : index
    %c0_14 = arith.constant 0 : index
    %7 = vector.load %arg7[%c0_13, %c0_14] : memref<32x864xf32, #tpu.memory_space<vmem>>, vector<32x256xf32>
    %cst = arith.constant dense<0.000000e+00> : vector<8x256xf32>
    %8 = tpu.matmul %0, %7, %cst {dimension_numbers = #tpu.dot_dimension_numbers<[1], [0], [0], [1], [0, 0, 1, 1], [], []>} : vector<8x32xf32>, vector<32x256xf32>, vector<8x256xf32> -> vector<8x256xf32>
    %c0_15 = arith.constant 0 : index
    %c0_16 = arith.constant 0 : index
    %9 = vector.load %arg10[%c0_15, %c0_16] : memref<1x866xf32, #tpu.memory_space<vmem>>, vector<1x256xf32>
    %10 = vector.broadcast %9 : vector<1x256xf32> to vector<8x256xf32>
    %11 = arith.addf %8, %10 : vector<8x256xf32>
    %12 = vector.extract_strided_slice %11 {offsets = [0, 0], sizes = [8, 64], strides = [1, 1]} : vector<8x256xf32> to vector<8x64xf32>
    %13 = math.tanh %12 : vector<8x64xf32>
    %14 = vector.extract_strided_slice %11 {offsets = [0, 64], sizes = [8, 64], strides = [1, 1]} : vector<8x256xf32> to vector<8x64xf32>
    %15 = vector.extract_strided_slice %11 {offsets = [0, 128], sizes = [8, 32], strides = [1, 1]} : vector<8x256xf32> to vector<8x32xf32>
    %16 = vector.extract_strided_slice %11 {offsets = [0, 160], sizes = [8, 96], strides = [1, 1]} : vector<8x256xf32> to vector<8x96xf32>
    %c0_17 = arith.constant 0 : index
    %c256 = arith.constant 256 : index
    %17 = vector.load %arg7[%c0_17, %c256] : memref<32x864xf32, #tpu.memory_space<vmem>>, vector<32x224xf32>
    %cst_18 = arith.constant dense<0.000000e+00> : vector<2x224xf32>
    %18 = tpu.matmul %2, %17, %cst_18 {dimension_numbers = #tpu.dot_dimension_numbers<[1], [0], [0], [1], [0, 0, 1, 1], [], []>} : vector<2x32xf32>, vector<32x224xf32>, vector<2x224xf32> -> vector<2x224xf32>
    %c0_19 = arith.constant 0 : index
    %c256_20 = arith.constant 256 : index
    %19 = vector.load %arg10[%c0_19, %c256_20] : memref<1x866xf32, #tpu.memory_space<vmem>>, vector<1x224xf32>
    %20 = vector.broadcast %19 : vector<1x224xf32> to vector<2x224xf32>
    %21 = arith.addf %18, %20 : vector<2x224xf32>
    %22 = vector.extract_strided_slice %21 {offsets = [0, 0], sizes = [2, 32], strides = [1, 1]} : vector<2x224xf32> to vector<2x32xf32>
    %23 = math.tanh %22 : vector<2x32xf32>
    %24 = vector.extract_strided_slice %21 {offsets = [0, 32], sizes = [2, 96], strides = [1, 1]} : vector<2x224xf32> to vector<2x96xf32>
    %25 = math.tanh %24 : vector<2x96xf32>
    %26 = vector.extract_strided_slice %21 {offsets = [0, 128], sizes = [2, 96], strides = [1, 1]} : vector<2x224xf32> to vector<2x96xf32>
    %cst_21 = arith.constant dense<0.000000e+00> : vector<8x96xf32>
    %27 = tpu.matmul %4, %25, %cst_21 {dimension_numbers = #tpu.dot_dimension_numbers<[1], [0], [0], [1], [0, 0, 1, 1], [], []>} : vector<8x2xbf16>, vector<2x96xf32>, vector<8x96xf32> -> vector<8x96xf32>
    %28 = vector.extract_strided_slice %27 {offsets = [0, 0], sizes = [8, 64], strides = [1, 1]} : vector<8x96xf32> to vector<8x64xf32>
    %29 = vector.extract_strided_slice %27 {offsets = [0, 64], sizes = [8, 32], strides = [1, 1]} : vector<8x96xf32> to vector<8x32xf32>
    %30 = arith.mulf %13, %28 : vector<8x64xf32>
    %c0_22 = arith.constant 0 : index
    %c32 = arith.constant 32 : index
    %31 = vector.load %arg8[%c0_22, %c32] : memref<64x34xf32, #tpu.memory_space<vmem>>, vector<64x2xf32>
    %cst_23 = arith.constant dense<0.000000e+00> : vector<8x2xf32>
    %32 = tpu.matmul %30, %31, %cst_23 {dimension_numbers = #tpu.dot_dimension_numbers<[1], [0], [0], [1], [0, 0, 1, 1], [], []>} : vector<8x64xf32>, vector<64x2xf32>, vector<8x2xf32> -> vector<8x2xf32>
    %c0_24 = arith.constant 0 : index
    %c544 = arith.constant 544 : index
    %33 = vector.load %arg10[%c0_24, %c544] : memref<1x866xf32, #tpu.memory_space<vmem>>, vector<1x2xf32>
    %34 = vector.broadcast %33 : vector<1x2xf32> to vector<8x2xf32>
    %35 = arith.addf %32, %34 : vector<8x2xf32>
    %36 = arith.extf %3 : vector<2x8xbf16> to vector<2x8xf32>
    %cst_25 = arith.constant dense<0.000000e+00> : vector<2xf32>
    %37 = vector.multi_reduction <add>, %36, %cst_25 [1] : vector<2x8xf32> to vector<2xf32>
    %38 = vector.shape_cast %37 : vector<2xf32> to vector<2x1xf32>
    %cst_26 = arith.constant dense<0.000000e+00> : vector<2x2xf32>
    %39 = tpu.matmul %3, %35, %cst_26 {dimension_numbers = #tpu.dot_dimension_numbers<[1], [0], [0], [1], [0, 0, 1, 1], [], []>} : vector<2x8xbf16>, vector<8x2xf32>, vector<2x2xf32> -> vector<2x2xf32>
    %40 = vector.broadcast %38 : vector<2x1xf32> to vector<2x2xf32>
    %41 = arith.divf %39, %40 : vector<2x2xf32>
    %cst_27 = arith.constant dense<0.000000e+00> : vector<8x2xf32>
    %42 = tpu.matmul %4, %41, %cst_27 {dimension_numbers = #tpu.dot_dimension_numbers<[1], [0], [0], [1], [0, 0, 1, 1], [], []>} : vector<8x2xbf16>, vector<2x2xf32>, vector<8x2xf32> -> vector<8x2xf32>
    %43 = arith.subf %35, %42 : vector<8x2xf32>
    %44 = math.exp %43 : vector<8x2xf32>
    %cst_28 = arith.constant dense<0.000000e+00> : vector<2x2xf32>
    %45 = tpu.matmul %3, %44, %cst_28 {dimension_numbers = #tpu.dot_dimension_numbers<[1], [0], [0], [1], [0, 0, 1, 1], [], []>} : vector<2x8xbf16>, vector<8x2xf32>, vector<2x2xf32> -> vector<2x2xf32>
    %cst_29 = arith.constant dense<0.000000e+00> : vector<8x2xf32>
    %46 = tpu.matmul %4, %45, %cst_29 {dimension_numbers = #tpu.dot_dimension_numbers<[1], [0], [0], [1], [0, 0, 1, 1], [], []>} : vector<8x2xbf16>, vector<2x2xf32>, vector<8x2xf32> -> vector<8x2xf32>
    %47 = arith.divf %44, %46 : vector<8x2xf32>
    %c0_30 = arith.constant 0 : index
    %c0_31 = arith.constant 0 : index
    %48 = vector.load %arg9[%c0_30, %c0_31] : memref<2x64xf32, #tpu.memory_space<vmem>>, vector<2x64xf32>
    %cst_32 = arith.constant dense<0.000000e+00> : vector<8x64xf32>
    %49 = tpu.matmul %47, %48, %cst_32 {dimension_numbers = #tpu.dot_dimension_numbers<[1], [0], [0], [1], [0, 0, 1, 1], [], []>} : vector<8x2xf32>, vector<2x64xf32>, vector<8x64xf32> -> vector<8x64xf32>
    %50 = arith.mulf %14, %49 : vector<8x64xf32>
    %cst_33 = arith.constant dense<0.000000e+00> : vector<2x64xf32>
    %51 = tpu.matmul %3, %50, %cst_33 {dimension_numbers = #tpu.dot_dimension_numbers<[1], [0], [0], [1], [0, 0, 1, 1], [], []>} : vector<2x8xbf16>, vector<8x64xf32>, vector<2x64xf32> -> vector<2x64xf32>
    %c0_34 = arith.constant 0 : index
    %c0_35 = arith.constant 0 : index
    %52 = vector.load %arg8[%c0_34, %c0_35] : memref<64x34xf32, #tpu.memory_space<vmem>>, vector<64x32xf32>
    %cst_36 = arith.constant dense<0.000000e+00> : vector<2x32xf32>
    %53 = tpu.matmul %51, %52, %cst_36 {dimension_numbers = #tpu.dot_dimension_numbers<[1], [0], [0], [1], [0, 0, 1, 1], [], []>} : vector<2x64xf32>, vector<64x32xf32>, vector<2x32xf32> -> vector<2x32xf32>
    %c0_37 = arith.constant 0 : index
    %c512 = arith.constant 512 : index
    %54 = vector.load %arg10[%c0_37, %c512] : memref<1x866xf32, #tpu.memory_space<vmem>>, vector<1x32xf32>
    %55 = vector.broadcast %54 : vector<1x32xf32> to vector<2x32xf32>
    %56 = arith.addf %53, %55 : vector<2x32xf32>
    %57 = math.tanh %56 : vector<2x32xf32>
    %c0_38 = arith.constant 0 : index
    %c480 = arith.constant 480 : index
    %58 = vector.load %arg7[%c0_38, %c480] : memref<32x864xf32, #tpu.memory_space<vmem>>, vector<32x32xf32>
    %cst_39 = arith.constant dense<0.000000e+00> : vector<9x32xf32>
    %59 = tpu.matmul %1, %58, %cst_39 {dimension_numbers = #tpu.dot_dimension_numbers<[1], [0], [0], [1], [0, 0, 1, 1], [], []>} : vector<9x32xf32>, vector<32x32xf32>, vector<9x32xf32> -> vector<9x32xf32>
    %c0_40 = arith.constant 0 : index
    %c480_41 = arith.constant 480 : index
    %60 = vector.load %arg10[%c0_40, %c480_41] : memref<1x866xf32, #tpu.memory_space<vmem>>, vector<1x32xf32>
    %61 = vector.broadcast %60 : vector<1x32xf32> to vector<9x32xf32>
    %62 = arith.addf %59, %61 : vector<9x32xf32>
    %cst_42 = arith.constant dense<0.000000e+00> : vector<9x32xf32>
    %63 = tpu.matmul %5, %0, %cst_42 {dimension_numbers = #tpu.dot_dimension_numbers<[1], [0], [0], [1], [0, 0, 1, 1], [], []>} : vector<9x8xbf16>, vector<8x32xf32>, vector<9x32xf32> -> vector<9x32xf32>
    %64 = arith.mulf %62, %63 : vector<9x32xf32>
    %cst_43 = arith.constant 0.000000e+00 : f32
    %65 = vector.broadcast %cst_43 : f32 to vector<9x32xf32>
    %66 = arith.cmpf ogt, %64, %65 : vector<9x32xf32>
    %cst_44 = arith.constant 1.000000e-01 : f32
    %67 = vector.broadcast %cst_44 : f32 to vector<9x32xf32>
    %68 = arith.mulf %67, %64 : vector<9x32xf32>
    %69 = arith.select %66, %64, %68 : vector<9x32xi1>, vector<9x32xf32>
    %cst_45 = arith.constant dense<0.000000e+00> : vector<8x32xf32>
    %70 = tpu.matmul %6, %69, %cst_45 {dimension_numbers = #tpu.dot_dimension_numbers<[1], [0], [0], [1], [0, 0, 1, 1], [], []>} : vector<8x9xbf16>, vector<9x32xf32>, vector<8x32xf32> -> vector<8x32xf32>
    %c0_46 = arith.constant 0 : index
    %c512_47 = arith.constant 512 : index
    %71 = vector.load %arg7[%c0_46, %c512_47] : memref<32x864xf32, #tpu.memory_space<vmem>>, vector<32x32xf32>
    %cst_48 = arith.constant dense<0.000000e+00> : vector<8x32xf32>
    %72 = tpu.matmul %70, %71, %cst_48 {dimension_numbers = #tpu.dot_dimension_numbers<[1], [0], [0], [1], [0, 0, 1, 1], [], []>} : vector<8x32xf32>, vector<32x32xf32>, vector<8x32xf32> -> vector<8x32xf32>
    %73 = arith.addf %72, %15 : vector<8x32xf32>
    %cst_49 = arith.constant 0.000000e+00 : f32
    %74 = vector.broadcast %cst_49 : f32 to vector<8x32xf32>
    %75 = arith.cmpf ogt, %73, %74 : vector<8x32xf32>
    %cst_50 = arith.constant 1.000000e-01 : f32
    %76 = vector.broadcast %cst_50 : f32 to vector<8x32xf32>
    %77 = arith.mulf %76, %73 : vector<8x32xf32>
    %78 = arith.select %75, %73, %77 : vector<8x32xi1>, vector<8x32xf32>
    %c0_51 = arith.constant 0 : index
    %c544_52 = arith.constant 544 : index
    %79 = vector.load %arg7[%c0_51, %c544_52] : memref<32x864xf32, #tpu.memory_space<vmem>>, vector<32x32xf32>
    %cst_53 = arith.constant dense<0.000000e+00> : vector<8x32xf32>
    %80 = tpu.matmul %78, %79, %cst_53 {dimension_numbers = #tpu.dot_dimension_numbers<[1], [0], [0], [1], [0, 0, 1, 1], [], []>} : vector<8x32xf32>, vector<32x32xf32>, vector<8x32xf32> -> vector<8x32xf32>
    %c0_54 = arith.constant 0 : index
    %c546 = arith.constant 546 : index
    %81 = vector.load %arg10[%c0_54, %c546] : memref<1x866xf32, #tpu.memory_space<vmem>>, vector<1x32xf32>
    %82 = vector.broadcast %81 : vector<1x32xf32> to vector<8x32xf32>
    %83 = arith.addf %80, %82 : vector<8x32xf32>
    %c0_55 = arith.constant 0 : index
    %c576 = arith.constant 576 : index
    %84 = vector.load %arg7[%c0_55, %c576] : memref<32x864xf32, #tpu.memory_space<vmem>>, vector<32x32xf32>
    %cst_56 = arith.constant dense<0.000000e+00> : vector<8x32xf32>
    %85 = tpu.matmul %29, %84, %cst_56 {dimension_numbers = #tpu.dot_dimension_numbers<[1], [0], [0], [1], [0, 0, 1, 1], [], []>} : vector<8x32xf32>, vector<32x32xf32>, vector<8x32xf32> -> vector<8x32xf32>
    %86 = arith.addf %83, %85 : vector<8x32xf32>
    %c0_57 = arith.constant 0 : index
    %c578 = arith.constant 578 : index
    %87 = vector.load %arg10[%c0_57, %c578] : memref<1x866xf32, #tpu.memory_space<vmem>>, vector<1x32xf32>
    %88 = vector.broadcast %87 : vector<1x32xf32> to vector<8x32xf32>
    %89 = arith.addf %86, %88 : vector<8x32xf32>
    %90 = arith.negf %89 : vector<8x32xf32>
    %91 = math.exp %90 : vector<8x32xf32>
    %cst_58 = arith.constant 1.000000e+00 : f32
    %92 = vector.broadcast %cst_58 : f32 to vector<8x32xf32>
    %93 = arith.addf %92, %91 : vector<8x32xf32>
    %94 = arith.divf %92, %93 : vector<8x32xf32>
    %95 = arith.mulf %94, %29 : vector<8x32xf32>
    %cst_59 = arith.constant 1.000000e+00 : f32
    %96 = vector.broadcast %cst_59 : f32 to vector<8x32xf32>
    %97 = arith.subf %96, %94 : vector<8x32xf32>
    %98 = arith.mulf %97, %78 : vector<8x32xf32>
    %99 = arith.addf %95, %98 : vector<8x32xf32>
    %c0_60 = arith.constant 0 : index
    %c608 = arith.constant 608 : index
    %100 = vector.load %arg7[%c0_60, %c608] : memref<32x864xf32, #tpu.memory_space<vmem>>, vector<32x96xf32>
    %cst_61 = arith.constant dense<0.000000e+00> : vector<8x96xf32>
    %101 = tpu.matmul %99, %100, %cst_61 {dimension_numbers = #tpu.dot_dimension_numbers<[1], [0], [0], [1], [0, 0, 1, 1], [], []>} : vector<8x32xf32>, vector<32x96xf32>, vector<8x96xf32> -> vector<8x96xf32>
    %c0_62 = arith.constant 0 : index
    %c610 = arith.constant 610 : index
    %102 = vector.load %arg10[%c0_62, %c610] : memref<1x866xf32, #tpu.memory_space<vmem>>, vector<1x96xf32>
    %103 = vector.broadcast %102 : vector<1x96xf32> to vector<8x96xf32>
    %104 = arith.addf %101, %103 : vector<8x96xf32>
    %105 = vector.extract_strided_slice %16 {offsets = [0, 0], sizes = [8, 32], strides = [1, 1]} : vector<8x96xf32> to vector<8x32xf32>
    %106 = vector.extract_strided_slice %104 {offsets = [0, 0], sizes = [8, 32], strides = [1, 1]} : vector<8x96xf32> to vector<8x32xf32>
    %107 = arith.addf %105, %106 : vector<8x32xf32>
    %108 = arith.negf %107 : vector<8x32xf32>
    %109 = math.exp %108 : vector<8x32xf32>
    %cst_63 = arith.constant 1.000000e+00 : f32
    %110 = vector.broadcast %cst_63 : f32 to vector<8x32xf32>
    %111 = arith.addf %110, %109 : vector<8x32xf32>
    %112 = arith.divf %110, %111 : vector<8x32xf32>
    %113 = vector.extract_strided_slice %16 {offsets = [0, 32], sizes = [8, 32], strides = [1, 1]} : vector<8x96xf32> to vector<8x32xf32>
    %114 = vector.extract_strided_slice %104 {offsets = [0, 32], sizes = [8, 32], strides = [1, 1]} : vector<8x96xf32> to vector<8x32xf32>
    %115 = arith.addf %113, %114 : vector<8x32xf32>
    %116 = arith.negf %115 : vector<8x32xf32>
    %117 = math.exp %116 : vector<8x32xf32>
    %cst_64 = arith.constant 1.000000e+00 : f32
    %118 = vector.broadcast %cst_64 : f32 to vector<8x32xf32>
    %119 = arith.addf %118, %117 : vector<8x32xf32>
    %120 = arith.divf %118, %119 : vector<8x32xf32>
    %121 = vector.extract_strided_slice %16 {offsets = [0, 64], sizes = [8, 32], strides = [1, 1]} : vector<8x96xf32> to vector<8x32xf32>
    %122 = vector.extract_strided_slice %104 {offsets = [0, 64], sizes = [8, 32], strides = [1, 1]} : vector<8x96xf32> to vector<8x32xf32>
    %123 = arith.mulf %112, %122 : vector<8x32xf32>
    %124 = arith.addf %121, %123 : vector<8x32xf32>
    %125 = math.tanh %124 : vector<8x32xf32>
    %cst_65 = arith.constant 1.000000e+00 : f32
    %126 = vector.broadcast %cst_65 : f32 to vector<8x32xf32>
    %127 = arith.subf %126, %120 : vector<8x32xf32>
    %128 = arith.mulf %127, %125 : vector<8x32xf32>
    %129 = arith.mulf %120, %99 : vector<8x32xf32>
    %130 = arith.addf %128, %129 : vector<8x32xf32>
    %c0_66 = arith.constant 0 : index
    %c0_67 = arith.constant 0 : index
    %131 = vector.load %arg11[%c0_66, %c0_67] : memref<8x32xf32, #tpu.memory_space<vmem>>, vector<8x32xf32>
    tpu.vector_store %arg11[%c0_66, %c0_67], %130 {strides = array<i32>} : memref<8x32xf32, #tpu.memory_space<vmem>>, vector<8x32xf32>,
    %c0_68 = arith.constant 0 : index
    %c704 = arith.constant 704 : index
    %132 = vector.load %arg7[%c0_68, %c704] : memref<32x864xf32, #tpu.memory_space<vmem>>, vector<32x32xf32>
    %cst_69 = arith.constant dense<0.000000e+00> : vector<2x32xf32>
    %133 = tpu.matmul %23, %132, %cst_69 {dimension_numbers = #tpu.dot_dimension_numbers<[1], [0], [0], [1], [0, 0, 1, 1], [], []>} : vector<2x32xf32>, vector<32x32xf32>, vector<2x32xf32> -> vector<2x32xf32>
    %c0_70 = arith.constant 0 : index
    %c706 = arith.constant 706 : index
    %134 = vector.load %arg10[%c0_70, %c706] : memref<1x866xf32, #tpu.memory_space<vmem>>, vector<1x32xf32>
    %135 = vector.broadcast %134 : vector<1x32xf32> to vector<2x32xf32>
    %136 = arith.addf %133, %135 : vector<2x32xf32>
    %c0_71 = arith.constant 0 : index
    %c736 = arith.constant 736 : index
    %137 = vector.load %arg7[%c0_71, %c736] : memref<32x864xf32, #tpu.memory_space<vmem>>, vector<32x32xf32>
    %cst_72 = arith.constant dense<0.000000e+00> : vector<2x32xf32>
    %138 = tpu.matmul %57, %137, %cst_72 {dimension_numbers = #tpu.dot_dimension_numbers<[1], [0], [0], [1], [0, 0, 1, 1], [], []>} : vector<2x32xf32>, vector<32x32xf32>, vector<2x32xf32> -> vector<2x32xf32>
    %139 = arith.addf %136, %138 : vector<2x32xf32>
    %c0_73 = arith.constant 0 : index
    %c738 = arith.constant 738 : index
    %140 = vector.load %arg10[%c0_73, %c738] : memref<1x866xf32, #tpu.memory_space<vmem>>, vector<1x32xf32>
    %141 = vector.broadcast %140 : vector<1x32xf32> to vector<2x32xf32>
    %142 = arith.addf %139, %141 : vector<2x32xf32>
    %143 = arith.negf %142 : vector<2x32xf32>
    %144 = math.exp %143 : vector<2x32xf32>
    %cst_74 = arith.constant 1.000000e+00 : f32
    %145 = vector.broadcast %cst_74 : f32 to vector<2x32xf32>
    %146 = arith.addf %145, %144 : vector<2x32xf32>
    %147 = arith.divf %145, %146 : vector<2x32xf32>
    %148 = arith.mulf %147, %57 : vector<2x32xf32>
    %cst_75 = arith.constant 1.000000e+00 : f32
    %149 = vector.broadcast %cst_75 : f32 to vector<2x32xf32>
    %150 = arith.subf %149, %147 : vector<2x32xf32>
    %151 = arith.mulf %150, %23 : vector<2x32xf32>
    %152 = arith.addf %148, %151 : vector<2x32xf32>
    %c0_76 = arith.constant 0 : index
    %c768 = arith.constant 768 : index
    %153 = vector.load %arg7[%c0_76, %c768] : memref<32x864xf32, #tpu.memory_space<vmem>>, vector<32x96xf32>
    %cst_77 = arith.constant dense<0.000000e+00> : vector<2x96xf32>
    %154 = tpu.matmul %152, %153, %cst_77 {dimension_numbers = #tpu.dot_dimension_numbers<[1], [0], [0], [1], [0, 0, 1, 1], [], []>} : vector<2x32xf32>, vector<32x96xf32>, vector<2x96xf32> -> vector<2x96xf32>
    %c0_78 = arith.constant 0 : index
    %c770 = arith.constant 770 : index
    %155 = vector.load %arg10[%c0_78, %c770] : memref<1x866xf32, #tpu.memory_space<vmem>>, vector<1x96xf32>
    %156 = vector.broadcast %155 : vector<1x96xf32> to vector<2x96xf32>
    %157 = arith.addf %154, %156 : vector<2x96xf32>
    %158 = vector.extract_strided_slice %26 {offsets = [0, 0], sizes = [2, 32], strides = [1, 1]} : vector<2x96xf32> to vector<2x32xf32>
    %159 = vector.extract_strided_slice %157 {offsets = [0, 0], sizes = [2, 32], strides = [1, 1]} : vector<2x96xf32> to vector<2x32xf32>
    %160 = arith.addf %158, %159 : vector<2x32xf32>
    %161 = arith.negf %160 : vector<2x32xf32>
    %162 = math.exp %161 : vector<2x32xf32>
    %cst_79 = arith.constant 1.000000e+00 : f32
    %163 = vector.broadcast %cst_79 : f32 to vector<2x32xf32>
    %164 = arith.addf %163, %162 : vector<2x32xf32>
    %165 = arith.divf %163, %164 : vector<2x32xf32>
    %166 = vector.extract_strided_slice %26 {offsets = [0, 32], sizes = [2, 32], strides = [1, 1]} : vector<2x96xf32> to vector<2x32xf32>
    %167 = vector.extract_strided_slice %157 {offsets = [0, 32], sizes = [2, 32], strides = [1, 1]} : vector<2x96xf32> to vector<2x32xf32>
    %168 = arith.addf %166, %167 : vector<2x32xf32>
    %169 = arith.negf %168 : vector<2x32xf32>
    %170 = math.exp %169 : vector<2x32xf32>
    %cst_80 = arith.constant 1.000000e+00 : f32
    %171 = vector.broadcast %cst_80 : f32 to vector<2x32xf32>
    %172 = arith.addf %171, %170 : vector<2x32xf32>
    %173 = arith.divf %171, %172 : vector<2x32xf32>
    %174 = vector.extract_strided_slice %26 {offsets = [0, 64], sizes = [2, 32], strides = [1, 1]} : vector<2x96xf32> to vector<2x32xf32>
    %175 = vector.extract_strided_slice %157 {offsets = [0, 64], sizes = [2, 32], strides = [1, 1]} : vector<2x96xf32> to vector<2x32xf32>
    %176 = arith.mulf %165, %175 : vector<2x32xf32>
    %177 = arith.addf %174, %176 : vector<2x32xf32>
    %178 = math.tanh %177 : vector<2x32xf32>
    %cst_81 = arith.constant 1.000000e+00 : f32
    %179 = vector.broadcast %cst_81 : f32 to vector<2x32xf32>
    %180 = arith.subf %179, %173 : vector<2x32xf32>
    %181 = arith.mulf %180, %178 : vector<2x32xf32>
    %182 = arith.mulf %173, %152 : vector<2x32xf32>
    %183 = arith.addf %181, %182 : vector<2x32xf32>
    %c0_82 = arith.constant 0 : index
    %c0_83 = arith.constant 0 : index
    %184 = vector.load %arg12[%c0_82, %c0_83] : memref<2x32xf32, #tpu.memory_space<vmem>>, vector<2x32xf32>
    tpu.vector_store %arg12[%c0_82, %c0_83], %183 {strides = array<i32>} : memref<2x32xf32, #tpu.memory_space<vmem>>, vector<2x32xf32>,
    return
  }
}

</mosaic_0001>

<llo_original>
// kernel: sconv1_forward.1
$region0: #{sconv1_forward.1}
  #allocation0 [shape = 'u32[]', space=smem, size = 0x4, offset = 0x4, fixed_abs, tag = 'smem constant byte address 0x4 - core index']
  #allocation1 [shape = 'u32[144,128]{1,0:T(1,128)}', space=vmem, size = 0x12000, scoped, tag = 'internal scratch']
  %s0 = inlined_call_operand.vmem [shape: f32[8,32], index: 0, kind: input, shape index: {}]
  %s1 = inlined_call_operand.vmem [shape: f32[9,32], index: 1, kind: input, shape index: {}]
  %s2 = inlined_call_operand.vmem [shape: f32[2,32], index: 2, kind: input, shape index: {}]
  %s3 = inlined_call_operand.vmem [shape: bf16[2,8], index: 3, kind: input, shape index: {}]
  %s4 = inlined_call_operand.vmem [shape: bf16[8,2], index: 4, kind: input, shape index: {}]
  %s5 = inlined_call_operand.vmem [shape: bf16[9,8], index: 5, kind: input, shape index: {}]
  %s6 = inlined_call_operand.vmem [shape: bf16[8,9], index: 6, kind: input, shape index: {}]
  %s7 = inlined_call_operand.hbm [shape: f32[32,864], index: 7, kind: input, shape index: {}]
  %s8 = inlined_call_operand.vmem [shape: f32[64,34], index: 8, kind: input, shape index: {}]
  %s9 = inlined_call_operand.vmem [shape: f32[2,64], index: 9, kind: input, shape index: {}]
  %s10 = inlined_call_operand.vmem [shape: f32[1,866], index: 10, kind: input, shape index: {}]
  %s11 = inlined_call_operand.hbm [shape: f32[8,32], index: 11, kind: output, shape index: {0}]
  %s12 = inlined_call_operand.hbm [shape: f32[2,32], index: 12, kind: output, shape index: {1}]
  %13 = xla_tuple %s11, %s12
  %s14 = sld [smem:[#allocation0]]
  $region66: #{sconv1_forward.1} parent=0
    _
  %s16 = ssub.s32 1, %s14
  %s17 = scalar_select 0, %s16, %s14
  $region1: #{sconv1_forward.1} parent=0
    #allocation2 [shape = 'u8[114688]{0}', space=vmem, size = 0x1c000, scoped, tag = 'input window, operand 7, single buffered']
    #allocation3 [shape = 's32[1]{0}', space=sflag, size = 0x4, scoped, tag = 'scoped memory for sconv1_forward.1']
    #allocation4 [shape = 's32[1]{0}', space=sflag, size = 0x4, scoped, tag = 'scoped memory for sconv1_forward.1']
    #allocation5 [shape = 'u8[4096]{0}', space=vmem, size = 0x1000, scoped, tag = 'output window, operand 0, single buffered']
    #allocation6 [shape = 'u8[1024]{0}', space=vmem, size = 0x400, scoped, tag = 'output window, operand 1, single buffered']
    #allocation7 [shape = 's32[1]{0}', space=sflag, size = 0x4, scoped, tag = 'scoped memory for sconv1_forward.1']
    %18 = vsyncpa [#allocation3], 0
    %19 = vsyncpa [#allocation4], 0
    %20 = vsyncpa [#allocation7], 0
    // Predicated region
    $region2: #{sconv1_forward.1} parent=1 // pred_check
      _
    $region3: #{sconv1_forward.1} parent=1 // pred_check_branch
      %22 = sbr.rel (0) target = $region5
    $region4: #{sconv1_forward.1} parent=1 // pred_region
      _
    $region5: #{sconv1_forward.1} parent=1 // pred_fallthru
      _
    // Predicated region
    $region6: #{sconv1_forward.1} parent=1 // pred_check
      _
    $region7: #{sconv1_forward.1} parent=1 // pred_check_branch
      %24 = sbr.rel (0) target = $region9
    $region8: #{sconv1_forward.1} parent=1 // pred_region
      _
    $region9: #{sconv1_forward.1} parent=1 // pred_fallthru
      _
    // Predicated region
    $region10: #{sconv1_forward.1} parent=1 // pred_check
      _
    $region11: #{sconv1_forward.1} parent=1 // pred_check_branch
      %26 = sbr.rel (0) target = $region13
    $region12: #{sconv1_forward.1} parent=1 // pred_region
      _
    $region13: #{sconv1_forward.1} parent=1 // pred_fallthru
      _
    // Predicated region
    $region14: #{sconv1_forward.1} parent=1 // pred_check
      _
    $region15: #{sconv1_forward.1} parent=1 // pred_check_branch
      %28 = sbr.rel (0) target = $region17
    $region16: #{sconv1_forward.1} parent=1 // pred_region
      _
    $region17: #{sconv1_forward.1} parent=1 // pred_fallthru
      _
    // Predicated region
    $region18: #{sconv1_forward.1} parent=1 // pred_check
      _
    $region19: #{sconv1_forward.1} parent=1 // pred_check_branch
      %30 = sbr.rel (0) target = $region21
    $region20: #{sconv1_forward.1} parent=1 // pred_region
      _
    $region21: #{sconv1_forward.1} parent=1 // pred_fallthru
      _
    // Predicated region
    $region22: #{sconv1_forward.1} parent=1 // pred_check
      _
    $region23: #{sconv1_forward.1} parent=1 // pred_check_branch
      %32 = sbr.rel (0) target = $region25
    $region24: #{sconv1_forward.1} parent=1 // pred_region
      _
    $region25: #{sconv1_forward.1} parent=1 // pred_fallthru
      _
    // Predicated region
    $region26: #{sconv1_forward.1} parent=1 // pred_check
      _
    $region27: #{sconv1_forward.1} parent=1 // pred_check_branch
      %34 = sbr.rel (0) target = $region29
    $region28: #{sconv1_forward.1} parent=1 // pred_region
      _
    $region29: #{sconv1_forward.1} parent=1 // pred_fallthru
      _
    // Predicated region
    $region30: #{sconv1_forward.1} parent=1 // pred_check
      _
    $region31: #{sconv1_forward.1} parent=1 // pred_check_branch
      %36 = sbr.rel (0) target = $region33
    $region32: #{sconv1_forward.1} parent=1 // pred_region
      %s38 = ssub.s32 3584, 3584
      %39 = vsyncadd [#allocation3], %s38
      %s40 = sshll.u32 [#allocation2], 4
      %s41 = int_to_ptr.vmem [resolvable:$true] %s40
      %46 = dma.hbm_to_vmem [thread:$0]  %s7, 3584, %s41, [#allocation3], 896, 896, 56
    $region33: #{sconv1_forward.1} parent=1 // pred_fallthru
      _
    // Predicated region
    $region34: #{sconv1_forward.1} parent=1 // pred_check
      _
    $region35: #{sconv1_forward.1} parent=1 // pred_check_branch
      %48 = sbr.rel (0) target = $region37
    $region36: #{sconv1_forward.1} parent=1 // pred_region
      _
    $region37: #{sconv1_forward.1} parent=1 // pred_fallthru
      _
    // Predicated region
    $region38: #{sconv1_forward.1} parent=1 // pred_check
      _
    $region39: #{sconv1_forward.1} parent=1 // pred_check_branch
      %50 = sbr.rel (0) target = $region41
    $region40: #{sconv1_forward.1} parent=1 // pred_region
      _
    $region41: #{sconv1_forward.1} parent=1 // pred_fallthru
      _
    // Predicated region
    $region42: #{sconv1_forward.1} parent=1 // pred_check
      _
    $region43: #{sconv1_forward.1} parent=1 // pred_check_branch
      %52 = sbr.rel (0) target = $region45
    $region44: #{sconv1_forward.1} parent=1 // pred_region
      _
    $region45: #{sconv1_forward.1} parent=1 // pred_fallthru
      _
    // Predicated region
    $region46: #{sconv1_forward.1} parent=1 // pred_check
      _
    $region47: #{sconv1_forward.1} parent=1 // pred_check_branch
      %54 = sbr.rel (0) target = $region49
    $region48: #{sconv1_forward.1} parent=1 // pred_region
      %55 = dma.done [#allocation3], 3584
    $region49: #{sconv1_forward.1} parent=1 // pred_fallthru
      _
    %v57 = vld [vmem:[%s0] sm:$0xff]
    %v58 = vld [vmem:[%s1] sm:$0xff]
    %v59 = vld [vmem:[%s1 + $0x8] sm:$0x1]
    %v60 = vld [vmem:[%s2] sm:$0x3]
    %v61 = vld [vmem:[%s3] sm:$0x1]
    %v62 = vld [vmem:[%s4] sm:$0xf]
    %v63 = vld [vmem:[%s5] sm:$0xf]
    %v64 = vld [vmem:[%s5 + $0x4] sm:$0x1]
    %v65 = vld [vmem:[%s6] sm:$0xf]
    %v66 = vld [vmem:[#allocation2] sm:$0xff]
    %v67 = vld [vmem:[#allocation2 + $0x8] sm:$0xff]
    %v68 = vld [vmem:[#allocation2 + $0x38] sm:$0xff]
    %v69 = vld [vmem:[#allocation2 + $0x40] sm:$0xff]
    %v70 = vld [vmem:[#allocation2 + $0x70] sm:$0xff]
    %v71 = vld [vmem:[#allocation2 + $0x78] sm:$0xff]
    %v72 = vld [vmem:[#allocation2 + $0xa8] sm:$0xff]
    %v73 = vld [vmem:[#allocation2 + $0xb0] sm:$0xff]
    %v74 = vld [vmem:[%s10] sm:$0x3]
    %v76 = vlaneseq
    %v77 = vshrl.u32 %v76, 7
    %v78 = vsub.s32 0, %v77
    %v79 = vrot.slane %v74, %v78
    %v80 = vlaneseq
    %v81 = vshrl.u32 %v80, 7
    %v82 = vsub.s32 1, %v81
    %v83 = vrot.slane %v74, %v82
    %vm86 = vcmask 261120
    %v88 = vsel %vm86, %v57, 0
    %90 = vmatprep.subr.mxu0 %v67
    %91 = vmatpush1.msra.mxu0 %v66
    %92 = vmatprep.subr.mxu0 %v69
    %93 = vmatpush1.msra.mxu0 %v68
    %94 = vmatprep.subr.mxu0 %v71
    %95 = vmatpush1.msra.mxu0 %v70
    %96 = vmatprep.subr.mxu0 %v73
    %97 = vmatpush1.msra.mxu0 %v72
    %98 = vmatprep.subr.mxu0 0.0
    %99 = vmatpush1.msra.mxu0 0.0
    %100 = vmatprep.subr.mxu0 0.0
    %101 = vmatpush1.msra.mxu0 0.0
    %102 = vmatprep.subr.mxu0 0.0
    %103 = vmatpush1.msra.mxu0 0.0
    %104 = vmatprep.subr.mxu0 0.0
    %105 = vmatpush1.msra.mxu0 0.0
    %106 = vmatprep.subr.mxu0 0.0
    %107 = vmatpush1.msra.mxu0 0.0
    %108 = vmatprep.subr.mxu0 0.0
    %109 = vmatpush1.msra.mxu0 0.0
    %110 = vmatprep.subr.mxu0 0.0
    %111 = vmatpush1.msra.mxu0 0.0
    %112 = vmatprep.subr.mxu0 0.0
    %113 = vmatpush1.msra.mxu0 0.0
    %114 = vmatprep.subr.mxu0 0.0
    %115 = vmatpush1.msra.mxu0 0.0
    %116 = vmatprep.subr.mxu0 0.0
    %117 = vmatpush1.msra.mxu0 0.0
    %118 = vmatprep.subr.mxu0 0.0
    %119 = vmatpush1.msra.mxu0 0.0
    %120 = vmatprep.subr.mxu0 0.0
    %121 = vmatpush1.msra.mxu0 0.0
    %122 = vmatprep.subr.mxu0 0.0
    %123 = vmatpush1.msra.mxu0 0.0
    %124 = vmatprep.subr.mxu0 0.0
    %125 = vmatpush1.msra.mxu0 0.0
    %126 = vmatprep.subr.mxu0 0.0
    %127 = vmatpush1.msra.mxu0 0.0
    %128 = vmatprep.subr.mxu0 0.0
    %129 = vmatpush1.msra.mxu0 0.0
    %130 = vmatprep.subr.mxu0 0.0
    %131 = vmatpush1.msra.mxu0 0.0
    %132 = vmatprep.subr.mxu0 0.0
    %133 = vmatpush1.msra.mxu0 0.0
    %134 = vmatprep.subr.mxu0 0.0
    %135 = vmatpush1.msra.mxu0 0.0
    %136 = vmatprep.subr.mxu0 0.0
    %137 = vmatpush1.msra.mxu0 0.0
    %138 = vmatprep.subr.mxu0 0.0
    %139 = vmatpush1.msra.mxu0 0.0
    %140 = vmatprep.subr.mxu0 0.0
    %141 = vmatpush1.msra.mxu0 0.0
    %142 = vmatprep.subr.mxu0 0.0
    %143 = vmatpush1.msra.mxu0 0.0
    %144 = vmatprep.subr.mxu0 0.0
    %145 = vmatpush1.msra.mxu0 0.0
    %146 = vmatprep.subr.mxu0 0.0
    %147 = vmatpush1.msra.mxu0 0.0
    %148 = vmatprep.subr.mxu0 0.0
    %149 = vmatpush1.msra.mxu0 0.0
    %150 = vmatprep.subr.mxu0 0.0
    %151 = vmatpush1.msra.mxu0 0.0
    %152 = vmatprep.subr.mxu0 0.0
    %153 = vmatpush1.msra.mxu0 0.0
    %154 = vmatprep.mubr.f32.mxu0 0.0
    %155 = vmatmul.mubr.f32.gmra.mrb[0].mxu0 %v88
    %v156 = vpop.f32.mrb[0].mxu0
    %v157 = vadd.f32 %v79, %v156
    %v158 = vpop.f32.mrb[0].mxu0
    %v159 = vadd.f32 %v83, %v158
    %160 = vdwg.mxu0
    %v161 = vtanh.pop %v157
    %v162 = vld [vmem:[#allocation2 + $0x10] sm:$0xff]
    %v163 = vld [vmem:[#allocation2 + $0x18] sm:$0xff]
    %v164 = vld [vmem:[#allocation2 + $0x48] sm:$0xff]
    %v165 = vld [vmem:[#allocation2 + $0x50] sm:$0xff]
    %v166 = vld [vmem:[#allocation2 + $0x80] sm:$0xff]
    %v167 = vld [vmem:[#allocation2 + $0x88] sm:$0xff]
    %v168 = vld [vmem:[#allocation2 + $0xb8] sm:$0xff]
    %v169 = vld [vmem:[#allocation2 + $0xc0] sm:$0xff]
    %v170 = vld [vmem:[%s10 + $0x2] sm:$0x3]
    %v172 = vlaneseq
    %v173 = vshrl.u32 %v172, 7
    %v174 = vsub.s32 0, %v173
    %v175 = vrot.slane %v170, %v174
    %v176 = vlaneseq
    %v177 = vshrl.u32 %v176, 7
    %v178 = vsub.s32 1, %v177
    %v179 = vrot.slane %v170, %v178
    %v183 = vsel %vm86, %v60, 0
    %185 = vmatprep.subr.mxu0 %v163
    %186 = vmatpush1.msra.mxu0 %v162
    %187 = vmatprep.subr.mxu0 %v165
    %188 = vmatpush1.msra.mxu0 %v164
    %189 = vmatprep.subr.mxu0 %v167
    %190 = vmatpush1.msra.mxu0 %v166
    %191 = vmatprep.subr.mxu0 %v169
    %192 = vmatpush1.msra.mxu0 %v168
    %193 = vmatprep.subr.mxu0 0.0
    %194 = vmatpush1.msra.mxu0 0.0
    %195 = vmatprep.subr.mxu0 0.0
    %196 = vmatpush1.msra.mxu0 0.0
    %197 = vmatprep.subr.mxu0 0.0
    %198 = vmatpush1.msra.mxu0 0.0
    %199 = vmatprep.subr.mxu0 0.0
    %200 = vmatpush1.msra.mxu0 0.0
    %201 = vmatprep.subr.mxu0 0.0
    %202 = vmatpush1.msra.mxu0 0.0
    %203 = vmatprep.subr.mxu0 0.0
    %204 = vmatpush1.msra.mxu0 0.0
    %205 = vmatprep.subr.mxu0 0.0
    %206 = vmatpush1.msra.mxu0 0.0
    %207 = vmatprep.subr.mxu0 0.0
    %208 = vmatpush1.msra.mxu0 0.0
    %209 = vmatprep.subr.mxu0 0.0
    %210 = vmatpush1.msra.mxu0 0.0
    %211 = vmatprep.subr.mxu0 0.0
    %212 = vmatpush1.msra.mxu0 0.0
    %213 = vmatprep.subr.mxu0 0.0
    %214 = vmatpush1.msra.mxu0 0.0
    %215 = vmatprep.subr.mxu0 0.0
    %216 = vmatpush1.msra.mxu0 0.0
    %217 = vmatprep.subr.mxu0 0.0
    %218 = vmatpush1.msra.mxu0 0.0
    %219 = vmatprep.subr.mxu0 0.0
    %220 = vmatpush1.msra.mxu0 0.0
    %221 = vmatprep.subr.mxu0 0.0
    %222 = vmatpush1.msra.mxu0 0.0
    %223 = vmatprep.subr.mxu0 0.0
    %224 = vmatpush1.msra.mxu0 0.0
    %225 = vmatprep.subr.mxu0 0.0
    %226 = vmatpush1.msra.mxu0 0.0
    %227 = vmatprep.subr.mxu0 0.0
    %228 = vmatpush1.msra.mxu0 0.0
    %229 = vmatprep.subr.mxu0 0.0
    %230 = vmatpush1.msra.mxu0 0.0
    %231 = vmatprep.subr.mxu0 0.0
    %232 = vmatpush1.msra.mxu0 0.0
    %233 = vmatprep.subr.mxu0 0.0
    %234 = vmatpush1.msra.mxu0 0.0
    %235 = vmatprep.subr.mxu0 0.0
    %236 = vmatpush1.msra.mxu0 0.0
    %237 = vmatprep.subr.mxu0 0.0
    %238 = vmatpush1.msra.mxu0 0.0
    %239 = vmatprep.subr.mxu0 0.0
    %240 = vmatpush1.msra.mxu0 0.0
    %241 = vmatprep.subr.mxu0 0.0
    %242 = vmatpush1.msra.mxu0 0.0
    %243 = vmatprep.subr.mxu0 0.0
    %244 = vmatpush1.msra.mxu0 0.0
    %245 = vmatprep.subr.mxu0 0.0
    %246 = vmatpush1.msra.mxu0 0.0
    %247 = vmatprep.subr.mxu0 0.0
    %248 = vmatpush1.msra.mxu0 0.0
    %249 = vmatprep.mubr.f32.mxu0 0.0
    %250 = vmatmul.mubr.f32.gmra.mrb[0].mxu0 %v183
    %v251 = vpop.f32.mrb[0].mxu0
    %v252 = vadd.f32 %v175, %v251
    %v253 = vpop.f32.mrb[0].mxu0
    %v254 = vadd.f32 %v179, %v253
    %255 = vdwg.mxu0
    %v256 = vtanh.pop %v252
    %258 = vrot.lane.b32.xlu0 %v256, 96
    %v259 = vpop.permute.xlu0 %258
    %vm260 = vcmask 15360
    %v262 = vsel %vm260, %v62, 0
    %vm264 = vcmask 1041408
    %v265 = vsel %vm264, %v259, 0
    %267 = vmatprep.subr.mxu0 0.0
    %268 = vmatpush1.msra.mxu0 %v265
    %269 = vmatprep.subr.mxu0 0.0
    %270 = vmatpush1.msra.mxu0 0.0
    %271 = vmatprep.subr.mxu0 0.0
    %272 = vmatpush1.msra.mxu0 0.0
    %273 = vmatprep.subr.mxu0 0.0
    %274 = vmatpush1.msra.mxu0 0.0
    %275 = vmatprep.subr.mxu0 0.0
    %276 = vmatpush1.msra.mxu0 0.0
    %277 = vmatprep.subr.mxu0 0.0
    %278 = vmatpush1.msra.mxu0 0.0
    %279 = vmatprep.subr.mxu0 0.0
    %280 = vmatpush1.msra.mxu0 0.0
    %281 = vmatprep.subr.mxu0 0.0
    %282 = vmatpush1.msra.mxu0 0.0
    %283 = vmatprep.subr.mxu0 0.0
    %284 = vmatpush1.msra.mxu0 0.0
    %285 = vmatprep.subr.mxu0 0.0
    %286 = vmatpush1.msra.mxu0 0.0
    %287 = vmatprep.subr.mxu0 0.0
    %288 = vmatpush1.msra.mxu0 0.0
    %289 = vmatprep.subr.mxu0 0.0
    %290 = vmatpush1.msra.mxu0 0.0
    %291 = vmatprep.subr.mxu0 0.0
    %292 = vmatpush1.msra.mxu0 0.0
    %293 = vmatprep.subr.mxu0 0.0
    %294 = vmatpush1.msra.mxu0 0.0
    %295 = vmatprep.subr.mxu0 0.0
    %296 = vmatpush1.msra.mxu0 0.0
    %297 = vmatprep.subr.mxu0 0.0
    %298 = vmatpush1.msra.mxu0 0.0
    %299 = vmatprep.subr.mxu0 0.0
    %300 = vmatpush1.msra.mxu0 0.0
    %301 = vmatprep.subr.mxu0 0.0
    %302 = vmatpush1.msra.mxu0 0.0
    %303 = vmatprep.subr.mxu0 0.0
    %304 = vmatpush1.msra.mxu0 0.0
    %305 = vmatprep.subr.mxu0 0.0
    %306 = vmatpush1.msra.mxu0 0.0
    %307 = vmatprep.subr.mxu0 0.0
    %308 = vmatpush1.msra.mxu0 0.0
    %309 = vmatprep.subr.mxu0 0.0
    %310 = vmatpush1.msra.mxu0 0.0
    %311 = vmatprep.subr.mxu0 0.0
    %312 = vmatpush1.msra.mxu0 0.0
    %313 = vmatprep.subr.mxu0 0.0
    %314 = vmatpush1.msra.mxu0 0.0
    %315 = vmatprep.subr.mxu0 0.0
    %316 = vmatpush1.msra.mxu0 0.0
    %317 = vmatprep.subr.mxu0 0.0
    %318 = vmatpush1.msra.mxu0 0.0
    %319 = vmatprep.subr.mxu0 0.0
    %320 = vmatpush1.msra.mxu0 0.0
    %321 = vmatprep.subr.mxu0 0.0
    %322 = vmatpush1.msra.mxu0 0.0
    %323 = vmatprep.subr.mxu0 0.0
    %324 = vmatpush1.msra.mxu0 0.0
    %325 = vmatprep.subr.mxu0 0.0
    %326 = vmatpush1.msra.mxu0 0.0
    %327 = vmatprep.subr.mxu0 0.0
    %328 = vmatpush1.msra.mxu0 0.0
    %329 = vmatprep.subr.mxu0 0.0
    %330 = vmatpush1.msra.mxu0 0.0
    %331 = vmatprep.mubr.bf16.mxu0 0
    %332 = vmatmul.mubr.bf16.gmra.mrb[0].mxu0 %v262
    %v333 = vpop.f32.mrb[0].mxu0
    %v334 = vadd.f32 0.0, %v333
    %v335 = vpop.f32.mrb[0].mxu0
    %v336 = vpop.f32.mrb[0].mxu0
    %v337 = vpop.f32.mrb[0].mxu0
    %338 = vdwg.mxu0
    %v339 = vmul.f32 %v161, %v334
    %v340 = vld [vmem:[%s8] sm:$0xff]
    %v341 = vld [vmem:[%s8 + $0x8] sm:$0xff]
    %v342 = vld [vmem:[%s8 + $0x10] sm:$0xff]
    %v343 = vld [vmem:[%s8 + $0x18] sm:$0xff]
    %v344 = vld [vmem:[%s8 + $0x20] sm:$0xff]
    %v345 = vld [vmem:[%s8 + $0x28] sm:$0xff]
    %v346 = vld [vmem:[%s8 + $0x30] sm:$0xff]
    %v347 = vld [vmem:[%s8 + $0x38] sm:$0xff]
    %v348 = vld [vmem:[%s10 + $0x4] sm:$0x1]
    %v350 = vlaneseq
    %v351 = vshrl.u32 %v350, 7
    %v352 = vsub.s32 0, %v351
    %v353 = vrot.slane %v348, %v352
    %362 = vrot.lane.b32.xlu0 %v340, 96
    %v363 = vpop.permute.xlu0 %362
    %364 = vrot.lane.b32.xlu0 %v341, 96
    %v365 = vpop.permute.xlu0 %364
    %366 = vrot.lane.b32.xlu0 %v342, 96
    %v367 = vpop.permute.xlu0 %366
    %368 = vrot.lane.b32.xlu0 %v343, 96
    %v369 = vpop.permute.xlu0 %368
    %370 = vrot.lane.b32.xlu0 %v344, 96
    %v371 = vpop.permute.xlu0 %370
    %372 = vrot.lane.b32.xlu0 %v345, 96
    %v373 = vpop.permute.xlu0 %372
    %374 = vrot.lane.b32.xlu0 %v346, 96
    %v375 = vpop.permute.xlu0 %374
    %376 = vrot.lane.b32.xlu0 %v347, 96
    %v377 = vpop.permute.xlu0 %376
    %386 = vrot.lane.b32.xlu0 %v353, 96
    %v387 = vpop.permute.xlu0 %386
    %vm389 = vcmask 523264
    %v391 = vsel %vm389, %v339, 0
    %393 = vmatprep.subr.mxu0 0.0
    %394 = vmatpush1.msra.mxu0 %v363
    %395 = vmatprep.subr.mxu0 0.0
    %396 = vmatpush1.msra.mxu0 %v365
    %397 = vmatprep.subr.mxu0 0.0
    %398 = vmatpush1.msra.mxu0 %v367
    %399 = vmatprep.subr.mxu0 0.0
    %400 = vmatpush1.msra.mxu0 %v369
    %401 = vmatprep.subr.mxu0 0.0
    %402 = vmatpush1.msra.mxu0 %v371
    %403 = vmatprep.subr.mxu0 0.0
    %404 = vmatpush1.msra.mxu0 %v373
    %405 = vmatprep.subr.mxu0 0.0
    %406 = vmatpush1.msra.mxu0 %v375
    %407 = vmatprep.subr.mxu0 0.0
    %408 = vmatpush1.msra.mxu0 %v377
    %409 = vmatprep.subr.mxu0 0.0
    %410 = vmatpush1.msra.mxu0 0.0
    %411 = vmatprep.subr.mxu0 0.0
    %412 = vmatpush1.msra.mxu0 0.0
    %413 = vmatprep.subr.mxu0 0.0
    %414 = vmatpush1.msra.mxu0 0.0
    %415 = vmatprep.subr.mxu0 0.0
    %416 = vmatpush1.msra.mxu0 0.0
    %417 = vmatprep.subr.mxu0 0.0
    %418 = vmatpush1.msra.mxu0 0.0
    %419 = vmatprep.subr.mxu0 0.0
    %420 = vmatpush1.msra.mxu0 0.0
    %421 = vmatprep.subr.mxu0 0.0
    %422 = vmatpush1.msra.mxu0 0.0
    %423 = vmatprep.subr.mxu0 0.0
    %424 = vmatpush1.msra.mxu0 0.0
    %425 = vmatprep.subr.mxu0 0.0
    %426 = vmatpush1.msra.mxu0 0.0
    %427 = vmatprep.subr.mxu0 0.0
    %428 = vmatpush1.msra.mxu0 0.0
    %429 = vmatprep.subr.mxu0 0.0
    %430 = vmatpush1.msra.mxu0 0.0
    %431 = vmatprep.subr.mxu0 0.0
    %432 = vmatpush1.msra.mxu0 0.0
    %433 = vmatprep.subr.mxu0 0.0
    %434 = vmatpush1.msra.mxu0 0.0
    %435 = vmatprep.subr.mxu0 0.0
    %436 = vmatpush1.msra.mxu0 0.0
    %437 = vmatprep.subr.mxu0 0.0
    %438 = vmatpush1.msra.mxu0 0.0
    %439 = vmatprep.subr.mxu0 0.0
    %440 = vmatpush1.msra.mxu0 0.0
    %441 = vmatprep.subr.mxu0 0.0
    %442 = vmatpush1.msra.mxu0 0.0
    %443 = vmatprep.subr.mxu0 0.0
    %444 = vmatpush1.msra.mxu0 0.0
    %445 = vmatprep.subr.mxu0 0.0
    %446 = vmatpush1.msra.mxu0 0.0
    %447 = vmatprep.subr.mxu0 0.0
    %448 = vmatpush1.msra.mxu0 0.0
    %449 = vmatprep.subr.mxu0 0.0
    %450 = vmatpush1.msra.mxu0 0.0
    %451 = vmatprep.subr.mxu0 0.0
    %452 = vmatpush1.msra.mxu0 0.0
    %453 = vmatprep.subr.mxu0 0.0
    %454 = vmatpush1.msra.mxu0 0.0
    %455 = vmatprep.subr.mxu0 0.0
    %456 = vmatpush1.msra.mxu0 0.0
    %457 = vmatprep.mubr.f32.mxu0 0.0
    %458 = vmatmul.mubr.f32.gmra.mrb[0].mxu0 %v391
    %v459 = vpop.f32.mrb[0].mxu0
    %v460 = vadd.f32 %v387, %v459
    %v461 = vpop.f32.mrb[0].mxu0
    %462 = vdwg.mxu0
    %v463 = vunpack.c.l.bf16 %v61
    %vm464 = vcmask 58368
    %v465 = vsel %vm464, %v463, 0.0
    %466 = vadd.xlane.f32.xlu0 %v465
    %v467 = vpop.xlane.xlu0 %466
    %vm468 = vcmask 64512
    %v470 = vsel %vm468, %v61, 0
    %472 = vmatprep.subr.mxu0 0.0
    %473 = vmatpush1.msra.mxu0 %v460
    %474 = vmatprep.subr.mxu0 0.0
    %475 = vmatpush1.msra.mxu0 0.0
    %476 = vmatprep.subr.mxu0 0.0
    %477 = vmatpush1.msra.mxu0 0.0
    %478 = vmatprep.subr.mxu0 0.0
    %479 = vmatpush1.msra.mxu0 0.0
    %480 = vmatprep.subr.mxu0 0.0
    %481 = vmatpush1.msra.mxu0 0.0
    %482 = vmatprep.subr.mxu0 0.0
    %483 = vmatpush1.msra.mxu0 0.0
    %484 = vmatprep.subr.mxu0 0.0
    %485 = vmatpush1.msra.mxu0 0.0
    %486 = vmatprep.subr.mxu0 0.0
    %487 = vmatpush1.msra.mxu0 0.0
    %488 = vmatprep.subr.mxu0 0.0
    %489 = vmatpush1.msra.mxu0 0.0
    %490 = vmatprep.subr.mxu0 0.0
    %491 = vmatpush1.msra.mxu0 0.0
    %492 = vmatprep.subr.mxu0 0.0
    %493 = vmatpush1.msra.mxu0 0.0
    %494 = vmatprep.subr.mxu0 0.0
    %495 = vmatpush1.msra.mxu0 0.0
    %496 = vmatprep.subr.mxu0 0.0
    %497 = vmatpush1.msra.mxu0 0.0
    %498 = vmatprep.subr.mxu0 0.0
    %499 = vmatpush1.msra.mxu0 0.0
    %500 = vmatprep.subr.mxu0 0.0
    %501 = vmatpush1.msra.mxu0 0.0
    %502 = vmatprep.subr.mxu0 0.0
    %503 = vmatpush1.msra.mxu0 0.0
    %504 = vmatprep.subr.mxu0 0.0
    %505 = vmatpush1.msra.mxu0 0.0
    %506 = vmatprep.subr.mxu0 0.0
    %507 = vmatpush1.msra.mxu0 0.0
    %508 = vmatprep.subr.mxu0 0.0
    %509 = vmatpush1.msra.mxu0 0.0
    %510 = vmatprep.subr.mxu0 0.0
    %511 = vmatpush1.msra.mxu0 0.0
    %512 = vmatprep.subr.mxu0 0.0
    %513 = vmatpush1.msra.mxu0 0.0
    %514 = vmatprep.subr.mxu0 0.0
    %515 = vmatpush1.msra.mxu0 0.0
    %516 = vmatprep.subr.mxu0 0.0
    %517 = vmatpush1.msra.mxu0 0.0
    %518 = vmatprep.subr.mxu0 0.0
    %519 = vmatpush1.msra.mxu0 0.0
    %520 = vmatprep.subr.mxu0 0.0
    %521 = vmatpush1.msra.mxu0 0.0
    %522 = vmatprep.subr.mxu0 0.0
    %523 = vmatpush1.msra.mxu0 0.0
    %524 = vmatprep.subr.mxu0 0.0
    %525 = vmatpush1.msra.mxu0 0.0
    %526 = vmatprep.subr.mxu0 0.0
    %527 = vmatpush1.msra.mxu0 0.0
    %528 = vmatprep.subr.mxu0 0.0
    %529 = vmatpush1.msra.mxu0 0.0
    %530 = vmatprep.subr.mxu0 0.0
    %531 = vmatpush1.msra.mxu0 0.0
    %532 = vmatprep.subr.mxu0 0.0
    %533 = vmatpush1.msra.mxu0 0.0
    %534 = vmatprep.subr.mxu0 0.0
    %535 = vmatpush1.msra.mxu0 0.0
    %536 = vmatprep.mubr.bf16.mxu0 0
    %537 = vmatmul.mubr.bf16.gmra.mrb[0].mxu0 %v470
    %v538 = vpop.f32.mrb[0].mxu0
    %v539 = vadd.f32 0.0, %v538
    %v540 = vpop.f32.mrb[0].mxu0
    %v541 = vpop.f32.mrb[0].mxu0
    %v542 = vpop.f32.mrb[0].mxu0
    %543 = vdwg.mxu0
    %v544 = vrcp.pop %v467
    %v545 = vmul.f32 %v539, %v544
    %v547 = vsel %vm264, %v545, 0
    %549 = vmatprep.subr.mxu0 0.0
    %550 = vmatpush1.msra.mxu0 %v547
    %551 = vmatprep.subr.mxu0 0.0
    %552 = vmatpush1.msra.mxu0 0.0
    %553 = vmatprep.subr.mxu0 0.0
    %554 = vmatpush1.msra.mxu0 0.0
    %555 = vmatprep.subr.mxu0 0.0
    %556 = vmatpush1.msra.mxu0 0.0
    %557 = vmatprep.subr.mxu0 0.0
    %558 = vmatpush1.msra.mxu0 0.0
    %559 = vmatprep.subr.mxu0 0.0
    %560 = vmatpush1.msra.mxu0 0.0
    %561 = vmatprep.subr.mxu0 0.0
    %562 = vmatpush1.msra.mxu0 0.0
    %563 = vmatprep.subr.mxu0 0.0
    %564 = vmatpush1.msra.mxu0 0.0
    %565 = vmatprep.subr.mxu0 0.0
    %566 = vmatpush1.msra.mxu0 0.0
    %567 = vmatprep.subr.mxu0 0.0
    %568 = vmatpush1.msra.mxu0 0.0
    %569 = vmatprep.subr.mxu0 0.0
    %570 = vmatpush1.msra.mxu0 0.0
    %571 = vmatprep.subr.mxu0 0.0
    %572 = vmatpush1.msra.mxu0 0.0
    %573 = vmatprep.subr.mxu0 0.0
    %574 = vmatpush1.msra.mxu0 0.0
    %575 = vmatprep.subr.mxu0 0.0
    %576 = vmatpush1.msra.mxu0 0.0
    %577 = vmatprep.subr.mxu0 0.0
    %578 = vmatpush1.msra.mxu0 0.0
    %579 = vmatprep.subr.mxu0 0.0
    %580 = vmatpush1.msra.mxu0 0.0
    %581 = vmatprep.subr.mxu0 0.0
    %582 = vmatpush1.msra.mxu0 0.0
    %583 = vmatprep.subr.mxu0 0.0
    %584 = vmatpush1.msra.mxu0 0.0
    %585 = vmatprep.subr.mxu0 0.0
    %586 = vmatpush1.msra.mxu0 0.0
    %587 = vmatprep.subr.mxu0 0.0
    %588 = vmatpush1.msra.mxu0 0.0
    %589 = vmatprep.subr.mxu0 0.0
    %590 = vmatpush1.msra.mxu0 0.0
    %591 = vmatprep.subr.mxu0 0.0
    %592 = vmatpush1.msra.mxu0 0.0
    %593 = vmatprep.subr.mxu0 0.0
    %594 = vmatpush1.msra.mxu0 0.0
    %595 = vmatprep.subr.mxu0 0.0
    %596 = vmatpush1.msra.mxu0 0.0
    %597 = vmatprep.subr.mxu0 0.0
    %598 = vmatpush1.msra.mxu0 0.0
    %599 = vmatprep.subr.mxu0 0.0
    %600 = vmatpush1.msra.mxu0 0.0
    %601 = vmatprep.subr.mxu0 0.0
    %602 = vmatpush1.msra.mxu0 0.0
    %603 = vmatprep.subr.mxu0 0.0
    %604 = vmatpush1.msra.mxu0 0.0
    %605 = vmatprep.subr.mxu0 0.0
    %606 = vmatpush1.msra.mxu0 0.0
    %607 = vmatprep.subr.mxu0 0.0
    %608 = vmatpush1.msra.mxu0 0.0
    %609 = vmatprep.subr.mxu0 0.0
    %610 = vmatpush1.msra.mxu0 0.0
    %611 = vmatprep.subr.mxu0 0.0
    %612 = vmatpush1.msra.mxu0 0.0
    %613 = vmatprep.mubr.bf16.mxu0 0
    %614 = vmatmul.mubr.bf16.gmra.mrb[0].mxu0 %v262
    %v615 = vpop.f32.mrb[0].mxu0
    %v616 = vadd.f32 0.0, %v615
    %v617 = vpop.f32.mrb[0].mxu0
    %v618 = vpop.f32.mrb[0].mxu0
    %v619 = vpop.f32.mrb[0].mxu0
    %620 = vdwg.mxu0
    %v621 = vsub.f32 %v460, %v616
    %v622 = vmul.f32 %v621, 1.442695
    %v623 = vpow.pop %v622
    %624 = vmatprep.subr.mxu0 0.0
    %625 = vmatpush1.msra.mxu0 %v623
    %626 = vmatprep.subr.mxu0 0.0
    %627 = vmatpush1.msra.mxu0 0.0
    %628 = vmatprep.subr.mxu0 0.0
    %629 = vmatpush1.msra.mxu0 0.0
    %630 = vmatprep.subr.mxu0 0.0
    %631 = vmatpush1.msra.mxu0 0.0
    %632 = vmatprep.subr.mxu0 0.0
    %633 = vmatpush1.msra.mxu0 0.0
    %634 = vmatprep.subr.mxu0 0.0
    %635 = vmatpush1.msra.mxu0 0.0
    %636 = vmatprep.subr.mxu0 0.0
    %637 = vmatpush1.msra.mxu0 0.0
    %638 = vmatprep.subr.mxu0 0.0
    %639 = vmatpush1.msra.mxu0 0.0
    %640 = vmatprep.subr.mxu0 0.0
    %641 = vmatpush1.msra.mxu0 0.0
    %642 = vmatprep.subr.mxu0 0.0
    %643 = vmatpush1.msra.mxu0 0.0
    %644 = vmatprep.subr.mxu0 0.0
    %645 = vmatpush1.msra.mxu0 0.0
    %646 = vmatprep.subr.mxu0 0.0
    %647 = vmatpush1.msra.mxu0 0.0
    %648 = vmatprep.subr.mxu0 0.0
    %649 = vmatpush1.msra.mxu0 0.0
    %650 = vmatprep.subr.mxu0 0.0
    %651 = vmatpush1.msra.mxu0 0.0
    %652 = vmatprep.subr.mxu0 0.0
    %653 = vmatpush1.msra.mxu0 0.0
    %654 = vmatprep.subr.mxu0 0.0
    %655 = vmatpush1.msra.mxu0 0.0
    %656 = vmatprep.subr.mxu0 0.0
    %657 = vmatpush1.msra.mxu0 0.0
    %658 = vmatprep.subr.mxu0 0.0
    %659 = vmatpush1.msra.mxu0 0.0
    %660 = vmatprep.subr.mxu0 0.0
    %661 = vmatpush1.msra.mxu0 0.0
    %662 = vmatprep.subr.mxu0 0.0
    %663 = vmatpush1.msra.mxu0 0.0
    %664 = vmatprep.subr.mxu0 0.0
    %665 = vmatpush1.msra.mxu0 0.0
    %666 = vmatprep.subr.mxu0 0.0
    %667 = vmatpush1.msra.mxu0 0.0
    %668 = vmatprep.subr.mxu0 0.0
    %669 = vmatpush1.msra.mxu0 0.0
    %670 = vmatprep.subr.mxu0 0.0
    %671 = vmatpush1.msra.mxu0 0.0
    %672 = vmatprep.subr.mxu0 0.0
    %673 = vmatpush1.msra.mxu0 0.0
    %674 = vmatprep.subr.mxu0 0.0
    %675 = vmatpush1.msra.mxu0 0.0
    %676 = vmatprep.subr.mxu0 0.0
    %677 = vmatpush1.msra.mxu0 0.0
    %678 = vmatprep.subr.mxu0 0.0
    %679 = vmatpush1.msra.mxu0 0.0
    %680 = vmatprep.subr.mxu0 0.0
    %681 = vmatpush1.msra.mxu0 0.0
    %682 = vmatprep.subr.mxu0 0.0
    %683 = vmatpush1.msra.mxu0 0.0
    %684 = vmatprep.subr.mxu0 0.0
    %685 = vmatpush1.msra.mxu0 0.0
    %686 = vmatprep.subr.mxu0 0.0
    %687 = vmatpush1.msra.mxu0 0.0
    %688 = vmatprep.mubr.bf16.mxu0 0
    %689 = vmatmul.mubr.bf16.gmra.mrb[0].mxu0 %v470
    %v690 = vpop.f32.mrb[0].mxu0
    %v691 = vadd.f32 0.0, %v690
    %v692 = vpop.f32.mrb[0].mxu0
    %v693 = vpop.f32.mrb[0].mxu0
    %v694 = vpop.f32.mrb[0].mxu0
    %695 = vdwg.mxu0
    %v697 = vsel %vm264, %v691, 0
    %699 = vmatprep.subr.mxu0 0.0
    %700 = vmatpush1.msra.mxu0 %v697
    %701 = vmatprep.subr.mxu0 0.0
    %702 = vmatpush1.msra.mxu0 0.0
    %703 = vmatprep.subr.mxu0 0.0
    %704 = vmatpush1.msra.mxu0 0.0
    %705 = vmatprep.subr.mxu0 0.0
    %706 = vmatpush1.msra.mxu0 0.0
    %707 = vmatprep.subr.mxu0 0.0
    %708 = vmatpush1.msra.mxu0 0.0
    %709 = vmatprep.subr.mxu0 0.0
    %710 = vmatpush1.msra.mxu0 0.0
    %711 = vmatprep.subr.mxu0 0.0
    %712 = vmatpush1.msra.mxu0 0.0
    %713 = vmatprep.subr.mxu0 0.0
    %714 = vmatpush1.msra.mxu0 0.0
    %715 = vmatprep.subr.mxu0 0.0
    %716 = vmatpush1.msra.mxu0 0.0
    %717 = vmatprep.subr.mxu0 0.0
    %718 = vmatpush1.msra.mxu0 0.0
    %719 = vmatprep.subr.mxu0 0.0
    %720 = vmatpush1.msra.mxu0 0.0
    %721 = vmatprep.subr.mxu0 0.0
    %722 = vmatpush1.msra.mxu0 0.0
    %723 = vmatprep.subr.mxu0 0.0
    %724 = vmatpush1.msra.mxu0 0.0
    %725 = vmatprep.subr.mxu0 0.0
    %726 = vmatpush1.msra.mxu0 0.0
    %727 = vmatprep.subr.mxu0 0.0
    %728 = vmatpush1.msra.mxu0 0.0
    %729 = vmatprep.subr.mxu0 0.0
    %730 = vmatpush1.msra.mxu0 0.0
    %731 = vmatprep.subr.mxu0 0.0
    %732 = vmatpush1.msra.mxu0 0.0
    %733 = vmatprep.subr.mxu0 0.0
    %734 = vmatpush1.msra.mxu0 0.0
    %735 = vmatprep.subr.mxu0 0.0
    %736 = vmatpush1.msra.mxu0 0.0
    %737 = vmatprep.subr.mxu0 0.0
    %738 = vmatpush1.msra.mxu0 0.0
    %739 = vmatprep.subr.mxu0 0.0
    %740 = vmatpush1.msra.mxu0 0.0
    %741 = vmatprep.subr.mxu0 0.0
    %742 = vmatpush1.msra.mxu0 0.0
    %743 = vmatprep.subr.mxu0 0.0
    %744 = vmatpush1.msra.mxu0 0.0
    %745 = vmatprep.subr.mxu0 0.0
    %746 = vmatpush1.msra.mxu0 0.0
    %747 = vmatprep.subr.mxu0 0.0
    %748 = vmatpush1.msra.mxu0 0.0
    %749 = vmatprep.subr.mxu0 0.0
    %750 = vmatpush1.msra.mxu0 0.0
    %751 = vmatprep.subr.mxu0 0.0
    %752 = vmatpush1.msra.mxu0 0.0
    %753 = vmatprep.subr.mxu0 0.0
    %754 = vmatpush1.msra.mxu0 0.0
    %755 = vmatprep.subr.mxu0 0.0
    %756 = vmatpush1.msra.mxu0 0.0
    %757 = vmatprep.subr.mxu0 0.0
    %758 = vmatpush1.msra.mxu0 0.0
    %759 = vmatprep.subr.mxu0 0.0
    %760 = vmatpush1.msra.mxu0 0.0
    %761 = vmatprep.subr.mxu0 0.0
    %762 = vmatpush1.msra.mxu0 0.0
    %763 = vmatprep.mubr.bf16.mxu0 0
    %764 = vmatmul.mubr.bf16.gmra.mrb[0].mxu0 %v262
    %v765 = vpop.f32.mrb[0].mxu0
    %v766 = vadd.f32 0.0, %v765
    %v767 = vpop.f32.mrb[0].mxu0
    %v768 = vpop.f32.mrb[0].mxu0
    %v769 = vpop.f32.mrb[0].mxu0
    %770 = vdwg.mxu0
    %v771 = vrcp.pop %v766
    %v772 = vmul.f32 %v623, %v771
    %v773 = vld [vmem:[%s9] sm:$0x3]
    %v775 = vsel %vm260, %v772, 0
    %v778 = vsel %vm264, %v773, 0
    %780 = vmatprep.subr.mxu0 0.0
    %781 = vmatpush1.msra.mxu0 %v778
    %782 = vmatprep.subr.mxu0 0.0
    %783 = vmatpush1.msra.mxu0 0.0
    %784 = vmatprep.subr.mxu0 0.0
    %785 = vmatpush1.msra.mxu0 0.0
    %786 = vmatprep.subr.mxu0 0.0
    %787 = vmatpush1.msra.mxu0 0.0
    %788 = vmatprep.subr.mxu0 0.0
    %789 = vmatpush1.msra.mxu0 0.0
    %790 = vmatprep.subr.mxu0 0.0
    %791 = vmatpush1.msra.mxu0 0.0
    %792 = vmatprep.subr.mxu0 0.0
    %793 = vmatpush1.msra.mxu0 0.0
    %794 = vmatprep.subr.mxu0 0.0
    %795 = vmatpush1.msra.mxu0 0.0
    %796 = vmatprep.subr.mxu0 0.0
    %797 = vmatpush1.msra.mxu0 0.0
    %798 = vmatprep.subr.mxu0 0.0
    %799 = vmatpush1.msra.mxu0 0.0
    %800 = vmatprep.subr.mxu0 0.0
    %801 = vmatpush1.msra.mxu0 0.0
    %802 = vmatprep.subr.mxu0 0.0
    %803 = vmatpush1.msra.mxu0 0.0
    %804 = vmatprep.subr.mxu0 0.0
    %805 = vmatpush1.msra.mxu0 0.0
    %806 = vmatprep.subr.mxu0 0.0
    %807 = vmatpush1.msra.mxu0 0.0
    %808 = vmatprep.subr.mxu0 0.0
    %809 = vmatpush1.msra.mxu0 0.0
    %810 = vmatprep.subr.mxu0 0.0
    %811 = vmatpush1.msra.mxu0 0.0
    %812 = vmatprep.subr.mxu0 0.0
    %813 = vmatpush1.msra.mxu0 0.0
    %814 = vmatprep.subr.mxu0 0.0
    %815 = vmatpush1.msra.mxu0 0.0
    %816 = vmatprep.subr.mxu0 0.0
    %817 = vmatpush1.msra.mxu0 0.0
    %818 = vmatprep.subr.mxu0 0.0
    %819 = vmatpush1.msra.mxu0 0.0
    %820 = vmatprep.subr.mxu0 0.0
    %821 = vmatpush1.msra.mxu0 0.0
    %822 = vmatprep.subr.mxu0 0.0
    %823 = vmatpush1.msra.mxu0 0.0
    %824 = vmatprep.subr.mxu0 0.0
    %825 = vmatpush1.msra.mxu0 0.0
    %826 = vmatprep.subr.mxu0 0.0
    %827 = vmatpush1.msra.mxu0 0.0
    %828 = vmatprep.subr.mxu0 0.0
    %829 = vmatpush1.msra.mxu0 0.0
    %830 = vmatprep.subr.mxu0 0.0
    %831 = vmatpush1.msra.mxu0 0.0
    %832 = vmatprep.subr.mxu0 0.0
    %833 = vmatpush1.msra.mxu0 0.0
    %834 = vmatprep.subr.mxu0 0.0
    %835 = vmatpush1.msra.mxu0 0.0
    %836 = vmatprep.subr.mxu0 0.0
    %837 = vmatpush1.msra.mxu0 0.0
    %838 = vmatprep.subr.mxu0 0.0
    %839 = vmatpush1.msra.mxu0 0.0
    %840 = vmatprep.subr.mxu0 0.0
    %841 = vmatpush1.msra.mxu0 0.0
    %842 = vmatprep.subr.mxu0 0.0
    %843 = vmatpush1.msra.mxu0 0.0
    %844 = vmatprep.mubr.f32.mxu0 0.0
    %845 = vmatmul.mubr.f32.gmra.mrb[0].mxu0 %v775
    %v846 = vpop.f32.mrb[0].mxu0
    %v847 = vadd.f32 0.0, %v846
    %v848 = vpop.f32.mrb[0].mxu0
    %849 = vdwg.mxu0
    %851 = vrot.lane.b32.xlu0 %v847, 64
    %v852 = vpop.permute.xlu0 %851
    %v854 = vmul.f32 %v157, %v852
    %856 = vrot.lane.b32.xlu0 %v854, 64
    %v857 = vpop.permute.xlu0 %856
    %859 = vmatprep.subr.mxu0 0.0
    %860 = vmatpush1.msra.mxu0 %v857
    %861 = vmatprep.subr.mxu0 0.0
    %862 = vmatpush1.msra.mxu0 0.0
    %863 = vmatprep.subr.mxu0 0.0
    %864 = vmatpush1.msra.mxu0 0.0
    %865 = vmatprep.subr.mxu0 0.0
    %866 = vmatpush1.msra.mxu0 0.0
    %867 = vmatprep.subr.mxu0 0.0
    %868 = vmatpush1.msra.mxu0 0.0
    %869 = vmatprep.subr.mxu0 0.0
    %870 = vmatpush1.msra.mxu0 0.0
    %871 = vmatprep.subr.mxu0 0.0
    %872 = vmatpush1.msra.mxu0 0.0
    %873 = vmatprep.subr.mxu0 0.0
    %874 = vmatpush1.msra.mxu0 0.0
    %875 = vmatprep.subr.mxu0 0.0
    %876 = vmatpush1.msra.mxu0 0.0
    %877 = vmatprep.subr.mxu0 0.0
    %878 = vmatpush1.msra.mxu0 0.0
    %879 = vmatprep.subr.mxu0 0.0
    %880 = vmatpush1.msra.mxu0 0.0
    %881 = vmatprep.subr.mxu0 0.0
    %882 = vmatpush1.msra.mxu0 0.0
    %883 = vmatprep.subr.mxu0 0.0
    %884 = vmatpush1.msra.mxu0 0.0
    %885 = vmatprep.subr.mxu0 0.0
    %886 = vmatpush1.msra.mxu0 0.0
    %887 = vmatprep.subr.mxu0 0.0
    %888 = vmatpush1.msra.mxu0 0.0
    %889 = vmatprep.subr.mxu0 0.0
    %890 = vmatpush1.msra.mxu0 0.0
    %891 = vmatprep.subr.mxu0 0.0
    %892 = vmatpush1.msra.mxu0 0.0
    %893 = vmatprep.subr.mxu0 0.0
    %894 = vmatpush1.msra.mxu0 0.0
    %895 = vmatprep.subr.mxu0 0.0
    %896 = vmatpush1.msra.mxu0 0.0
    %897 = vmatprep.subr.mxu0 0.0
    %898 = vmatpush1.msra.mxu0 0.0
    %899 = vmatprep.subr.mxu0 0.0
    %900 = vmatpush1.msra.mxu0 0.0
    %901 = vmatprep.subr.mxu0 0.0
    %902 = vmatpush1.msra.mxu0 0.0
    %903 = vmatprep.subr.mxu0 0.0
    %904 = vmatpush1.msra.mxu0 0.0
    %905 = vmatprep.subr.mxu0 0.0
    %906 = vmatpush1.msra.mxu0 0.0
    %907 = vmatprep.subr.mxu0 0.0
    %908 = vmatpush1.msra.mxu0 0.0
    %909 = vmatprep.subr.mxu0 0.0
    %910 = vmatpush1.msra.mxu0 0.0
    %911 = vmatprep.subr.mxu0 0.0
    %912 = vmatpush1.msra.mxu0 0.0
    %913 = vmatprep.subr.mxu0 0.0
    %914 = vmatpush1.msra.mxu0 0.0
    %915 = vmatprep.subr.mxu0 0.0
    %916 = vmatpush1.msra.mxu0 0.0
    %917 = vmatprep.subr.mxu0 0.0
    %918 = vmatpush1.msra.mxu0 0.0
    %919 = vmatprep.subr.mxu0 0.0
    %920 = vmatpush1.msra.mxu0 0.0
    %921 = vmatprep.subr.mxu0 0.0
    %922 = vmatpush1.msra.mxu0 0.0
    %923 = vmatprep.mubr.bf16.mxu0 0
    %924 = vmatmul.mubr.bf16.gmra.mrb[0].mxu0 %v470
    %v925 = vpop.f32.mrb[0].mxu0
    %v926 = vadd.f32 0.0, %v925
    %v927 = vpop.f32.mrb[0].mxu0
    %v928 = vpop.f32.mrb[0].mxu0
    %v929 = vpop.f32.mrb[0].mxu0
    %930 = vdwg.mxu0
    %v933 = vsel %vm389, %v926, 0
    %935 = vmatprep.subr.mxu0 0.0
    %936 = vmatpush1.msra.mxu0 %v340
    %937 = vmatprep.subr.mxu0 0.0
    %938 = vmatpush1.msra.mxu0 %v341
    %939 = vmatprep.subr.mxu0 0.0
    %940 = vmatpush1.msra.mxu0 %v342
    %941 = vmatprep.subr.mxu0 0.0
    %942 = vmatpush1.msra.mxu0 %v343
    %943 = vmatprep.subr.mxu0 0.0
    %944 = vmatpush1.msra.mxu0 %v344
    %945 = vmatprep.subr.mxu0 0.0
    %946 = vmatpush1.msra.mxu0 %v345
    %947 = vmatprep.subr.mxu0 0.0
    %948 = vmatpush1.msra.mxu0 %v346
    %949 = vmatprep.subr.mxu0 0.0
    %950 = vmatpush1.msra.mxu0 %v347
    %951 = vmatprep.subr.mxu0 0.0
    %952 = vmatpush1.msra.mxu0 0.0
    %953 = vmatprep.subr.mxu0 0.0
    %954 = vmatpush1.msra.mxu0 0.0
    %955 = vmatprep.subr.mxu0 0.0
    %956 = vmatpush1.msra.mxu0 0.0
    %957 = vmatprep.subr.mxu0 0.0
    %958 = vmatpush1.msra.mxu0 0.0
    %959 = vmatprep.subr.mxu0 0.0
    %960 = vmatpush1.msra.mxu0 0.0
    %961 = vmatprep.subr.mxu0 0.0
    %962 = vmatpush1.msra.mxu0 0.0
    %963 = vmatprep.subr.mxu0 0.0
    %964 = vmatpush1.msra.mxu0 0.0
    %965 = vmatprep.subr.mxu0 0.0
    %966 = vmatpush1.msra.mxu0 0.0
    %967 = vmatprep.subr.mxu0 0.0
    %968 = vmatpush1.msra.mxu0 0.0
    %969 = vmatprep.subr.mxu0 0.0
    %970 = vmatpush1.msra.mxu0 0.0
    %971 = vmatprep.subr.mxu0 0.0
    %972 = vmatpush1.msra.mxu0 0.0
    %973 = vmatprep.subr.mxu0 0.0
    %974 = vmatpush1.msra.mxu0 0.0
    %975 = vmatprep.subr.mxu0 0.0
    %976 = vmatpush1.msra.mxu0 0.0
    %977 = vmatprep.subr.mxu0 0.0
    %978 = vmatpush1.msra.mxu0 0.0
    %979 = vmatprep.subr.mxu0 0.0
    %980 = vmatpush1.msra.mxu0 0.0
    %981 = vmatprep.subr.mxu0 0.0
    %982 = vmatpush1.msra.mxu0 0.0
    %983 = vmatprep.subr.mxu0 0.0
    %984 = vmatpush1.msra.mxu0 0.0
    %985 = vmatprep.subr.mxu0 0.0
    %986 = vmatpush1.msra.mxu0 0.0
    %987 = vmatprep.subr.mxu0 0.0
    %988 = vmatpush1.msra.mxu0 0.0
    %989 = vmatprep.subr.mxu0 0.0
    %990 = vmatpush1.msra.mxu0 0.0
    %991 = vmatprep.subr.mxu0 0.0
    %992 = vmatpush1.msra.mxu0 0.0
    %993 = vmatprep.subr.mxu0 0.0
    %994 = vmatpush1.msra.mxu0 0.0
    %995 = vmatprep.subr.mxu0 0.0
    %996 = vmatpush1.msra.mxu0 0.0
    %997 = vmatprep.subr.mxu0 0.0
    %998 = vmatpush1.msra.mxu0 0.0
    %999 = vmatprep.mubr.f32.mxu0 0.0
    %1000 = vmatmul.mubr.f32.gmra.mrb[0].mxu0 %v933
    %v1001 = vpop.f32.mrb[0].mxu0
    %v1002 = vadd.f32 %v353, %v1001
    %v1003 = vpop.f32.mrb[0].mxu0
    %1004 = vdwg.mxu0
    %v1005 = vtanh.pop %v1002
    %v1006 = vld [vmem:[%s10 + $0x3] sm:$0x1]
    %v1008 = vlaneseq
    %v1009 = vshrl.u32 %v1008, 7
    %v1010 = vsub.s32 0, %v1009
    %v1011 = vrot.slane %v1006, %v1010
    %1016 = vrot.lane.b32.xlu0 %v163, 32
    %v1017 = vpop.permute.xlu0 %1016
    %1018 = vrot.lane.b32.xlu0 %v165, 32
    %v1019 = vpop.permute.xlu0 %1018
    %1020 = vrot.lane.b32.xlu0 %v167, 32
    %v1021 = vpop.permute.xlu0 %1020
    %1022 = vrot.lane.b32.xlu0 %v169, 32
    %v1023 = vpop.permute.xlu0 %1022
    %1028 = vrot.lane.b32.xlu0 %v1011, 32
    %v1029 = vpop.permute.xlu0 %1028
    %v1032 = vsel %vm86, %v58, 0
    %v1035 = vsel %vm86, %v59, 0
    %1037 = vmatprep.subr.mxu0 0.0
    %1038 = vmatpush1.msra.mxu0 %v1017
    %1039 = vmatprep.subr.mxu0 0.0
    %1040 = vmatpush1.msra.mxu0 %v1019
    %1041 = vmatprep.subr.mxu0 0.0
    %1042 = vmatpush1.msra.mxu0 %v1021
    %1043 = vmatprep.subr.mxu0 0.0
    %1044 = vmatpush1.msra.mxu0 %v1023
    %1045 = vmatprep.subr.mxu0 0.0
    %1046 = vmatpush1.msra.mxu0 0.0
    %1047 = vmatprep.subr.mxu0 0.0
    %1048 = vmatpush1.msra.mxu0 0.0
    %1049 = vmatprep.subr.mxu0 0.0
    %1050 = vmatpush1.msra.mxu0 0.0
    %1051 = vmatprep.subr.mxu0 0.0
    %1052 = vmatpush1.msra.mxu0 0.0
    %1053 = vmatprep.subr.mxu0 0.0
    %1054 = vmatpush1.msra.mxu0 0.0
    %1055 = vmatprep.subr.mxu0 0.0
    %1056 = vmatpush1.msra.mxu0 0.0
    %1057 = vmatprep.subr.mxu0 0.0
    %1058 = vmatpush1.msra.mxu0 0.0
    %1059 = vmatprep.subr.mxu0 0.0
    %1060 = vmatpush1.msra.mxu0 0.0
    %1061 = vmatprep.subr.mxu0 0.0
    %1062 = vmatpush1.msra.mxu0 0.0
    %1063 = vmatprep.subr.mxu0 0.0
    %1064 = vmatpush1.msra.mxu0 0.0
    %1065 = vmatprep.subr.mxu0 0.0
    %1066 = vmatpush1.msra.mxu0 0.0
    %1067 = vmatprep.subr.mxu0 0.0
    %1068 = vmatpush1.msra.mxu0 0.0
    %1069 = vmatprep.subr.mxu0 0.0
    %1070 = vmatpush1.msra.mxu0 0.0
    %1071 = vmatprep.subr.mxu0 0.0
    %1072 = vmatpush1.msra.mxu0 0.0
    %1073 = vmatprep.subr.mxu0 0.0
    %1074 = vmatpush1.msra.mxu0 0.0
    %1075 = vmatprep.subr.mxu0 0.0
    %1076 = vmatpush1.msra.mxu0 0.0
    %1077 = vmatprep.subr.mxu0 0.0
    %1078 = vmatpush1.msra.mxu0 0.0
    %1079 = vmatprep.subr.mxu0 0.0
    %1080 = vmatpush1.msra.mxu0 0.0
    %1081 = vmatprep.subr.mxu0 0.0
    %1082 = vmatpush1.msra.mxu0 0.0
    %1083 = vmatprep.subr.mxu0 0.0
    %1084 = vmatpush1.msra.mxu0 0.0
    %1085 = vmatprep.subr.mxu0 0.0
    %1086 = vmatpush1.msra.mxu0 0.0
    %1087 = vmatprep.subr.mxu0 0.0
    %1088 = vmatpush1.msra.mxu0 0.0
    %1089 = vmatprep.subr.mxu0 0.0
    %1090 = vmatpush1.msra.mxu0 0.0
    %1091 = vmatprep.subr.mxu0 0.0
    %1092 = vmatpush1.msra.mxu0 0.0
    %1093 = vmatprep.subr.mxu0 0.0
    %1094 = vmatpush1.msra.mxu0 0.0
    %1095 = vmatprep.subr.mxu0 0.0
    %1096 = vmatpush1.msra.mxu0 0.0
    %1097 = vmatprep.subr.mxu0 0.0
    %1098 = vmatpush1.msra.mxu0 0.0
    %1099 = vmatprep.subr.mxu0 0.0
    %1100 = vmatpush1.msra.mxu0 0.0
    %1101 = vmatprep.mubr.f32.mxu0 0.0
    %1102 = vmatmul.mubr.f32.gmra.mrb[0].mxu0 %v1032
    %v1103 = vpop.f32.mrb[0].mxu0
    %v1104 = vadd.f32 %v1029, %v1103
    %v1105 = vpop.f32.mrb[0].mxu0
    %1106 = vmatprep.mubr.f32.mxu0 0.0
    %1107 = vmatmul.mubr.f32.gmra.mrb[0].mxu0 %v1035
    %v1108 = vpop.f32.mrb[0].mxu0
    %v1109 = vadd.f32 %v1029, %v1108
    %v1110 = vpop.f32.mrb[0].mxu0
    %1111 = vdwg.mxu0
    %v1114 = vunpack.c.l.b16 %v63
    %v1115 = vunpack.c.l.b16 %v64
    %v1116 = vpack.c.b16 %v1115, %v1114
    %v1118 = vsel %vm468, %v1116, 0
    %1120 = vmatprep.subr.mxu0 0.0
    %1121 = vmatpush1.msra.mxu0 %v57
    %1122 = vmatprep.subr.mxu0 0.0
    %1123 = vmatpush1.msra.mxu0 0.0
    %1124 = vmatprep.subr.mxu0 0.0
    %1125 = vmatpush1.msra.mxu0 0.0
    %1126 = vmatprep.subr.mxu0 0.0
    %1127 = vmatpush1.msra.mxu0 0.0
    %1128 = vmatprep.subr.mxu0 0.0
    %1129 = vmatpush1.msra.mxu0 0.0
    %1130 = vmatprep.subr.mxu0 0.0
    %1131 = vmatpush1.msra.mxu0 0.0
    %1132 = vmatprep.subr.mxu0 0.0
    %1133 = vmatpush1.msra.mxu0 0.0
    %1134 = vmatprep.subr.mxu0 0.0
    %1135 = vmatpush1.msra.mxu0 0.0
    %1136 = vmatprep.subr.mxu0 0.0
    %1137 = vmatpush1.msra.mxu0 0.0
    %1138 = vmatprep.subr.mxu0 0.0
    %1139 = vmatpush1.msra.mxu0 0.0
    %1140 = vmatprep.subr.mxu0 0.0
    %1141 = vmatpush1.msra.mxu0 0.0
    %1142 = vmatprep.subr.mxu0 0.0
    %1143 = vmatpush1.msra.mxu0 0.0
    %1144 = vmatprep.subr.mxu0 0.0
    %1145 = vmatpush1.msra.mxu0 0.0
    %1146 = vmatprep.subr.mxu0 0.0
    %1147 = vmatpush1.msra.mxu0 0.0
    %1148 = vmatprep.subr.mxu0 0.0
    %1149 = vmatpush1.msra.mxu0 0.0
    %1150 = vmatprep.subr.mxu0 0.0
    %1151 = vmatpush1.msra.mxu0 0.0
    %1152 = vmatprep.subr.mxu0 0.0
    %1153 = vmatpush1.msra.mxu0 0.0
    %1154 = vmatprep.subr.mxu0 0.0
    %1155 = vmatpush1.msra.mxu0 0.0
    %1156 = vmatprep.subr.mxu0 0.0
    %1157 = vmatpush1.msra.mxu0 0.0
    %1158 = vmatprep.subr.mxu0 0.0
    %1159 = vmatpush1.msra.mxu0 0.0
    %1160 = vmatprep.subr.mxu0 0.0
    %1161 = vmatpush1.msra.mxu0 0.0
    %1162 = vmatprep.subr.mxu0 0.0
    %1163 = vmatpush1.msra.mxu0 0.0
    %1164 = vmatprep.subr.mxu0 0.0
    %1165 = vmatpush1.msra.mxu0 0.0
    %1166 = vmatprep.subr.mxu0 0.0
    %1167 = vmatpush1.msra.mxu0 0.0
    %1168 = vmatprep.subr.mxu0 0.0
    %1169 = vmatpush1.msra.mxu0 0.0
    %1170 = vmatprep.subr.mxu0 0.0
    %1171 = vmatpush1.msra.mxu0 0.0
    %1172 = vmatprep.subr.mxu0 0.0
    %1173 = vmatpush1.msra.mxu0 0.0
    %1174 = vmatprep.subr.mxu0 0.0
    %1175 = vmatpush1.msra.mxu0 0.0
    %1176 = vmatprep.subr.mxu0 0.0
    %1177 = vmatpush1.msra.mxu0 0.0
    %1178 = vmatprep.subr.mxu0 0.0
    %1179 = vmatpush1.msra.mxu0 0.0
    %1180 = vmatprep.subr.mxu0 0.0
    %1181 = vmatpush1.msra.mxu0 0.0
    %1182 = vmatprep.subr.mxu0 0.0
    %1183 = vmatpush1.msra.mxu0 0.0
    %1184 = vmatprep.mubr.bf16.mxu0 0
    %1185 = vmatmul.mubr.bf16.gmra.mrb[0].mxu0 %v1118
    %v1186 = vpop.f32.mrb[0].mxu0
    %v1187 = vadd.f32 0.0, %v1186
    %v1188 = vpop.f32.mrb[0].mxu0
    %v1189 = vpop.f32.mrb[0].mxu0
    %v1190 = vadd.f32 0.0, %v1189
    %v1191 = vpop.f32.mrb[0].mxu0
    %1192 = vdwg.mxu0
    %v1193 = vmul.f32 %v1104, %v1187
    %v1194 = vmul.f32 %v1109, %v1190
    %vm1195 = vcmp.gt.f32.partialorder %v1193, 0.0
    %vm1196 = vcmp.gt.f32.partialorder %v1194, 0.0
    %v1197 = vmul.f32 %v1193, 0.1
    %v1198 = vmul.f32 %v1194, 0.1
    %v1199 = vsel %vm1195, %v1193, %v1197
    %v1200 = vsel %vm1196, %v1194, %v1198
    %vm1201 = vcmask 72704
    %v1203 = vsel %vm1201, %v65, 0
    %vm1205 = vcmask 1040384
    %v1207 = vsel %vm1205, %v1200, 0
    %1209 = vmatprep.subr.mxu0 0.0
    %1210 = vmatpush1.msra.mxu0 %v1199
    %1211 = vmatprep.subr.mxu0 0.0
    %1212 = vmatpush1.msra.mxu0 %v1207
    %1213 = vmatprep.subr.mxu0 0.0
    %1214 = vmatpush1.msra.mxu0 0.0
    %1215 = vmatprep.subr.mxu0 0.0
    %1216 = vmatpush1.msra.mxu0 0.0
    %1217 = vmatprep.subr.mxu0 0.0
    %1218 = vmatpush1.msra.mxu0 0.0
    %1219 = vmatprep.subr.mxu0 0.0
    %1220 = vmatpush1.msra.mxu0 0.0
    %1221 = vmatprep.subr.mxu0 0.0
    %1222 = vmatpush1.msra.mxu0 0.0
    %1223 = vmatprep.subr.mxu0 0.0
    %1224 = vmatpush1.msra.mxu0 0.0
    %1225 = vmatprep.subr.mxu0 0.0
    %1226 = vmatpush1.msra.mxu0 0.0
    %1227 = vmatprep.subr.mxu0 0.0
    %1228 = vmatpush1.msra.mxu0 0.0
    %1229 = vmatprep.subr.mxu0 0.0
    %1230 = vmatpush1.msra.mxu0 0.0
    %1231 = vmatprep.subr.mxu0 0.0
    %1232 = vmatpush1.msra.mxu0 0.0
    %1233 = vmatprep.subr.mxu0 0.0
    %1234 = vmatpush1.msra.mxu0 0.0
    %1235 = vmatprep.subr.mxu0 0.0
    %1236 = vmatpush1.msra.mxu0 0.0
    %1237 = vmatprep.subr.mxu0 0.0
    %1238 = vmatpush1.msra.mxu0 0.0
    %1239 = vmatprep.subr.mxu0 0.0
    %1240 = vmatpush1.msra.mxu0 0.0
    %1241 = vmatprep.subr.mxu0 0.0
    %1242 = vmatpush1.msra.mxu0 0.0
    %1243 = vmatprep.subr.mxu0 0.0
    %1244 = vmatpush1.msra.mxu0 0.0
    %1245 = vmatprep.subr.mxu0 0.0
    %1246 = vmatpush1.msra.mxu0 0.0
    %1247 = vmatprep.subr.mxu0 0.0
    %1248 = vmatpush1.msra.mxu0 0.0
    %1249 = vmatprep.subr.mxu0 0.0
    %1250 = vmatpush1.msra.mxu0 0.0
    %1251 = vmatprep.subr.mxu0 0.0
    %1252 = vmatpush1.msra.mxu0 0.0
    %1253 = vmatprep.subr.mxu0 0.0
    %1254 = vmatpush1.msra.mxu0 0.0
    %1255 = vmatprep.subr.mxu0 0.0
    %1256 = vmatpush1.msra.mxu0 0.0
    %1257 = vmatprep.subr.mxu0 0.0
    %1258 = vmatpush1.msra.mxu0 0.0
    %1259 = vmatprep.subr.mxu0 0.0
    %1260 = vmatpush1.msra.mxu0 0.0
    %1261 = vmatprep.subr.mxu0 0.0
    %1262 = vmatpush1.msra.mxu0 0.0
    %1263 = vmatprep.subr.mxu0 0.0
    %1264 = vmatpush1.msra.mxu0 0.0
    %1265 = vmatprep.subr.mxu0 0.0
    %1266 = vmatpush1.msra.mxu0 0.0
    %1267 = vmatprep.subr.mxu0 0.0
    %1268 = vmatpush1.msra.mxu0 0.0
    %1269 = vmatprep.subr.mxu0 0.0
    %1270 = vmatpush1.msra.mxu0 0.0
    %1271 = vmatprep.subr.mxu0 0.0
    %1272 = vmatpush1.msra.mxu0 0.0
    %1273 = vmatprep.mubr.bf16.mxu0 0
    %1274 = vmatmul.mubr.bf16.gmra.mrb[0].mxu0 %v1203
    %v1275 = vpop.f32.mrb[0].mxu0
    %v1276 = vadd.f32 0.0, %v1275
    %v1277 = vpop.f32.mrb[0].mxu0
    %v1278 = vpop.f32.mrb[0].mxu0
    %v1279 = vpop.f32.mrb[0].mxu0
    %1280 = vdwg.mxu0
    %v1281 = vld [vmem:[#allocation2 + $0x20] sm:$0xff]
    %v1282 = vld [vmem:[#allocation2 + $0x58] sm:$0xff]
    %v1283 = vld [vmem:[#allocation2 + $0x90] sm:$0xff]
    %v1284 = vld [vmem:[#allocation2 + $0xc8] sm:$0xff]
    %v1286 = vsel %vm86, %v1276, 0
    %1288 = vmatprep.subr.mxu0 0.0
    %1289 = vmatpush1.msra.mxu0 %v1281
    %1290 = vmatprep.subr.mxu0 0.0
    %1291 = vmatpush1.msra.mxu0 %v1282
    %1292 = vmatprep.subr.mxu0 0.0
    %1293 = vmatpush1.msra.mxu0 %v1283
    %1294 = vmatprep.subr.mxu0 0.0
    %1295 = vmatpush1.msra.mxu0 %v1284
    %1296 = vmatprep.subr.mxu0 0.0
    %1297 = vmatpush1.msra.mxu0 0.0
    %1298 = vmatprep.subr.mxu0 0.0
    %1299 = vmatpush1.msra.mxu0 0.0
    %1300 = vmatprep.subr.mxu0 0.0
    %1301 = vmatpush1.msra.mxu0 0.0
    %1302 = vmatprep.subr.mxu0 0.0
    %1303 = vmatpush1.msra.mxu0 0.0
    %1304 = vmatprep.subr.mxu0 0.0
    %1305 = vmatpush1.msra.mxu0 0.0
    %1306 = vmatprep.subr.mxu0 0.0
    %1307 = vmatpush1.msra.mxu0 0.0
    %1308 = vmatprep.subr.mxu0 0.0
    %1309 = vmatpush1.msra.mxu0 0.0
    %1310 = vmatprep.subr.mxu0 0.0
    %1311 = vmatpush1.msra.mxu0 0.0
    %1312 = vmatprep.subr.mxu0 0.0
    %1313 = vmatpush1.msra.mxu0 0.0
    %1314 = vmatprep.subr.mxu0 0.0
    %1315 = vmatpush1.msra.mxu0 0.0
    %1316 = vmatprep.subr.mxu0 0.0
    %1317 = vmatpush1.msra.mxu0 0.0
    %1318 = vmatprep.subr.mxu0 0.0
    %1319 = vmatpush1.msra.mxu0 0.0
    %1320 = vmatprep.subr.mxu0 0.0
    %1321 = vmatpush1.msra.mxu0 0.0
    %1322 = vmatprep.subr.mxu0 0.0
    %1323 = vmatpush1.msra.mxu0 0.0
    %1324 = vmatprep.subr.mxu0 0.0
    %1325 = vmatpush1.msra.mxu0 0.0
    %1326 = vmatprep.subr.mxu0 0.0
    %1327 = vmatpush1.msra.mxu0 0.0
    %1328 = vmatprep.subr.mxu0 0.0
    %1329 = vmatpush1.msra.mxu0 0.0
    %1330 = vmatprep.subr.mxu0 0.0
    %1331 = vmatpush1.msra.mxu0 0.0
    %1332 = vmatprep.subr.mxu0 0.0
    %1333 = vmatpush1.msra.mxu0 0.0
    %1334 = vmatprep.subr.mxu0 0.0
    %1335 = vmatpush1.msra.mxu0 0.0
    %1336 = vmatprep.subr.mxu0 0.0
    %1337 = vmatpush1.msra.mxu0 0.0
    %1338 = vmatprep.subr.mxu0 0.0
    %1339 = vmatpush1.msra.mxu0 0.0
    %1340 = vmatprep.subr.mxu0 0.0
    %1341 = vmatpush1.msra.mxu0 0.0
    %1342 = vmatprep.subr.mxu0 0.0
    %1343 = vmatpush1.msra.mxu0 0.0
    %1344 = vmatprep.subr.mxu0 0.0
    %1345 = vmatpush1.msra.mxu0 0.0
    %1346 = vmatprep.subr.mxu0 0.0
    %1347 = vmatpush1.msra.mxu0 0.0
    %1348 = vmatprep.subr.mxu0 0.0
    %1349 = vmatpush1.msra.mxu0 0.0
    %1350 = vmatprep.subr.mxu0 0.0
    %1351 = vmatpush1.msra.mxu0 0.0
    %1352 = vmatprep.mubr.f32.mxu0 0.0
    %1353 = vmatmul.mubr.f32.gmra.mrb[0].mxu0 %v1286
    %v1354 = vpop.f32.mrb[0].mxu0
    %v1355 = vadd.f32 %v159, %v1354
    %v1356 = vpop.f32.mrb[0].mxu0
    %1357 = vdwg.mxu0
    %vm1358 = vcmp.gt.f32.partialorder %v1355, 0.0
    %v1359 = vmul.f32 %v1355, 0.1
    %v1360 = vsel %vm1358, %v1355, %v1359
    %1365 = vrot.lane.b32.xlu0 %v1281, 96
    %v1366 = vpop.permute.xlu0 %1365
    %1367 = vrot.lane.b32.xlu0 %v1282, 96
    %v1368 = vpop.permute.xlu0 %1367
    %1369 = vrot.lane.b32.xlu0 %v1283, 96
    %v1370 = vpop.permute.xlu0 %1369
    %1371 = vrot.lane.b32.xlu0 %v1284, 96
    %v1372 = vpop.permute.xlu0 %1371
    %1377 = vrot.lane.b32.xlu0 %v353, 94
    %v1378 = vpop.permute.xlu0 %1377
    %v1381 = vsel %vm86, %v1360, 0
    %1383 = vmatprep.subr.mxu0 0.0
    %1384 = vmatpush1.msra.mxu0 %v1366
    %1385 = vmatprep.subr.mxu0 0.0
    %1386 = vmatpush1.msra.mxu0 %v1368
    %1387 = vmatprep.subr.mxu0 0.0
    %1388 = vmatpush1.msra.mxu0 %v1370
    %1389 = vmatprep.subr.mxu0 0.0
    %1390 = vmatpush1.msra.mxu0 %v1372
    %1391 = vmatprep.subr.mxu0 0.0
    %1392 = vmatpush1.msra.mxu0 0.0
    %1393 = vmatprep.subr.mxu0 0.0
    %1394 = vmatpush1.msra.mxu0 0.0
    %1395 = vmatprep.subr.mxu0 0.0
    %1396 = vmatpush1.msra.mxu0 0.0
    %1397 = vmatprep.subr.mxu0 0.0
    %1398 = vmatpush1.msra.mxu0 0.0
    %1399 = vmatprep.subr.mxu0 0.0
    %1400 = vmatpush1.msra.mxu0 0.0
    %1401 = vmatprep.subr.mxu0 0.0
    %1402 = vmatpush1.msra.mxu0 0.0
    %1403 = vmatprep.subr.mxu0 0.0
    %1404 = vmatpush1.msra.mxu0 0.0
    %1405 = vmatprep.subr.mxu0 0.0
    %1406 = vmatpush1.msra.mxu0 0.0
    %1407 = vmatprep.subr.mxu0 0.0
    %1408 = vmatpush1.msra.mxu0 0.0
    %1409 = vmatprep.subr.mxu0 0.0
    %1410 = vmatpush1.msra.mxu0 0.0
    %1411 = vmatprep.subr.mxu0 0.0
    %1412 = vmatpush1.msra.mxu0 0.0
    %1413 = vmatprep.subr.mxu0 0.0
    %1414 = vmatpush1.msra.mxu0 0.0
    %1415 = vmatprep.subr.mxu0 0.0
    %1416 = vmatpush1.msra.mxu0 0.0
    %1417 = vmatprep.subr.mxu0 0.0
    %1418 = vmatpush1.msra.mxu0 0.0
    %1419 = vmatprep.subr.mxu0 0.0
    %1420 = vmatpush1.msra.mxu0 0.0
    %1421 = vmatprep.subr.mxu0 0.0
    %1422 = vmatpush1.msra.mxu0 0.0
    %1423 = vmatprep.subr.mxu0 0.0
    %1424 = vmatpush1.msra.mxu0 0.0
    %1425 = vmatprep.subr.mxu0 0.0
    %1426 = vmatpush1.msra.mxu0 0.0
    %1427 = vmatprep.subr.mxu0 0.0
    %1428 = vmatpush1.msra.mxu0 0.0
    %1429 = vmatprep.subr.mxu0 0.0
    %1430 = vmatpush1.msra.mxu0 0.0
    %1431 = vmatprep.subr.mxu0 0.0
    %1432 = vmatpush1.msra.mxu0 0.0
    %1433 = vmatprep.subr.mxu0 0.0
    %1434 = vmatpush1.msra.mxu0 0.0
    %1435 = vmatprep.subr.mxu0 0.0
    %1436 = vmatpush1.msra.mxu0 0.0
    %1437 = vmatprep.subr.mxu0 0.0
    %1438 = vmatpush1.msra.mxu0 0.0
    %1439 = vmatprep.subr.mxu0 0.0
    %1440 = vmatpush1.msra.mxu0 0.0
    %1441 = vmatprep.subr.mxu0 0.0
    %1442 = vmatpush1.msra.mxu0 0.0
    %1443 = vmatprep.subr.mxu0 0.0
    %1444 = vmatpush1.msra.mxu0 0.0
    %1445 = vmatprep.subr.mxu0 0.0
    %1446 = vmatpush1.msra.mxu0 0.0
    %1447 = vmatprep.mubr.f32.mxu0 0.0
    %1448 = vmatmul.mubr.f32.gmra.mrb[0].mxu0 %v1381
    %v1449 = vpop.f32.mrb[0].mxu0
    %v1450 = vadd.f32 %v1378, %v1449
    %v1451 = vpop.f32.mrb[0].mxu0
    %1452 = vdwg.mxu0
    %1454 = vrot.lane.b32.xlu0 %v334, 64
    %v1455 = vpop.permute.xlu0 %1454
    %1456 = vrot.lane.b32.xlu0 %v1281, 64
    %v1457 = vpop.permute.xlu0 %1456
    %1458 = vrot.lane.b32.xlu0 %v1282, 64
    %v1459 = vpop.permute.xlu0 %1458
    %1460 = vrot.lane.b32.xlu0 %v1283, 64
    %v1461 = vpop.permute.xlu0 %1460
    %1462 = vrot.lane.b32.xlu0 %v1284, 64
    %v1463 = vpop.permute.xlu0 %1462
    %v1468 = vsel %vm86, %v1455, 0
    %1470 = vmatprep.subr.mxu0 0.0
    %1471 = vmatpush1.msra.mxu0 %v1457
    %1472 = vmatprep.subr.mxu0 0.0
    %1473 = vmatpush1.msra.mxu0 %v1459
    %1474 = vmatprep.subr.mxu0 0.0
    %1475 = vmatpush1.msra.mxu0 %v1461
    %1476 = vmatprep.subr.mxu0 0.0
    %1477 = vmatpush1.msra.mxu0 %v1463
    %1478 = vmatprep.subr.mxu0 0.0
    %1479 = vmatpush1.msra.mxu0 0.0
    %1480 = vmatprep.subr.mxu0 0.0
    %1481 = vmatpush1.msra.mxu0 0.0
    %1482 = vmatprep.subr.mxu0 0.0
    %1483 = vmatpush1.msra.mxu0 0.0
    %1484 = vmatprep.subr.mxu0 0.0
    %1485 = vmatpush1.msra.mxu0 0.0
    %1486 = vmatprep.subr.mxu0 0.0
    %1487 = vmatpush1.msra.mxu0 0.0
    %1488 = vmatprep.subr.mxu0 0.0
    %1489 = vmatpush1.msra.mxu0 0.0
    %1490 = vmatprep.subr.mxu0 0.0
    %1491 = vmatpush1.msra.mxu0 0.0
    %1492 = vmatprep.subr.mxu0 0.0
    %1493 = vmatpush1.msra.mxu0 0.0
    %1494 = vmatprep.subr.mxu0 0.0
    %1495 = vmatpush1.msra.mxu0 0.0
    %1496 = vmatprep.subr.mxu0 0.0
    %1497 = vmatpush1.msra.mxu0 0.0
    %1498 = vmatprep.subr.mxu0 0.0
    %1499 = vmatpush1.msra.mxu0 0.0
    %1500 = vmatprep.subr.mxu0 0.0
    %1501 = vmatpush1.msra.mxu0 0.0
    %1502 = vmatprep.subr.mxu0 0.0
    %1503 = vmatpush1.msra.mxu0 0.0
    %1504 = vmatprep.subr.mxu0 0.0
    %1505 = vmatpush1.msra.mxu0 0.0
    %1506 = vmatprep.subr.mxu0 0.0
    %1507 = vmatpush1.msra.mxu0 0.0
    %1508 = vmatprep.subr.mxu0 0.0
    %1509 = vmatpush1.msra.mxu0 0.0
    %1510 = vmatprep.subr.mxu0 0.0
    %1511 = vmatpush1.msra.mxu0 0.0
    %1512 = vmatprep.subr.mxu0 0.0
    %1513 = vmatpush1.msra.mxu0 0.0
    %1514 = vmatprep.subr.mxu0 0.0
    %1515 = vmatpush1.msra.mxu0 0.0
    %1516 = vmatprep.subr.mxu0 0.0
    %1517 = vmatpush1.msra.mxu0 0.0
    %1518 = vmatprep.subr.mxu0 0.0
    %1519 = vmatpush1.msra.mxu0 0.0
    %1520 = vmatprep.subr.mxu0 0.0
    %1521 = vmatpush1.msra.mxu0 0.0
    %1522 = vmatprep.subr.mxu0 0.0
    %1523 = vmatpush1.msra.mxu0 0.0
    %1524 = vmatprep.subr.mxu0 0.0
    %1525 = vmatpush1.msra.mxu0 0.0
    %1526 = vmatprep.subr.mxu0 0.0
    %1527 = vmatpush1.msra.mxu0 0.0
    %1528 = vmatprep.subr.mxu0 0.0
    %1529 = vmatpush1.msra.mxu0 0.0
    %1530 = vmatprep.subr.mxu0 0.0
    %1531 = vmatpush1.msra.mxu0 0.0
    %1532 = vmatprep.subr.mxu0 0.0
    %1533 = vmatpush1.msra.mxu0 0.0
    %1534 = vmatprep.mubr.f32.mxu0 0.0
    %1535 = vmatmul.mubr.f32.gmra.mrb[0].mxu0 %v1468
    %v1536 = vpop.f32.mrb[0].mxu0
    %v1537 = vadd.f32 0.0, %v1536
    %v1538 = vpop.f32.mrb[0].mxu0
    %1539 = vdwg.mxu0
    %v1540 = vadd.f32 %v1450, %v1537
    %1541 = vrot.lane.b32.xlu0 %v353, 62
    %v1542 = vpop.permute.xlu0 %1541
    %v1544 = vadd.f32 %v1540, %v1542
    %v1545 = vxor.u32 %v1544, 2147483648
    %v1546 = vmul.f32 %v1545, 1.442695
    %v1547 = vpow.pop %v1546
    %v1548 = vadd.f32 %v1547, 1.0
    %v1549 = vrcp.pop %v1548
    %v1550 = vmul.f32 1.0, %v1549
    %v1552 = vmul.f32 %v1550, %v1455
    %v1553 = vsub.f32 1.0, %v1550
    %v1554 = vmul.f32 %v1553, %v1360
    %v1555 = vadd.f32 %v1552, %v1554
    %v1556 = vld [vmem:[#allocation2 + $0x20] sm:$0xff]
    %v1557 = vld [vmem:[#allocation2 + $0x28] sm:$0xff]
    %v1558 = vld [vmem:[#allocation2 + $0x58] sm:$0xff]
    %v1559 = vld [vmem:[#allocation2 + $0x60] sm:$0xff]
    %v1560 = vld [vmem:[#allocation2 + $0x90] sm:$0xff]
    %v1561 = vld [vmem:[#allocation2 + $0x98] sm:$0xff]
    %v1562 = vld [vmem:[#allocation2 + $0xc8] sm:$0xff]
    %v1563 = vld [vmem:[#allocation2 + $0xd0] sm:$0xff]
    %v1564 = vld [vmem:[%s10 + $0x4] sm:$0x3]
    %v1566 = vlaneseq
    %v1567 = vshrl.u32 %v1566, 7
    %v1568 = vsub.s32 0, %v1567
    %v1569 = vrot.slane %v1564, %v1568
    %v1570 = vlaneseq
    %v1571 = vshrl.u32 %v1570, 7
    %v1572 = vsub.s32 1, %v1571
    %v1573 = vrot.slane %v1564, %v1572
    %1582 = vrot.lane.b32.xlu0 %v1556, 32
    %v1583 = vpop.permute.xlu0 %1582
    %1584 = vrot.lane.b32.xlu0 %v1557, 32
    %v1585 = vpop.permute.xlu0 %1584
    %1586 = vrot.lane.b32.xlu0 %v1558, 32
    %v1587 = vpop.permute.xlu0 %1586
    %1588 = vrot.lane.b32.xlu0 %v1559, 32
    %v1589 = vpop.permute.xlu0 %1588
    %1590 = vrot.lane.b32.xlu0 %v1560, 32
    %v1591 = vpop.permute.xlu0 %1590
    %1592 = vrot.lane.b32.xlu0 %v1561, 32
    %v1593 = vpop.permute.xlu0 %1592
    %1594 = vrot.lane.b32.xlu0 %v1562, 32
    %v1595 = vpop.permute.xlu0 %1594
    %1596 = vrot.lane.b32.xlu0 %v1563, 32
    %v1597 = vpop.permute.xlu0 %1596
    %v1598 = vsel %vm86, %v1583, %v1585
    %v1599 = vsel %vm86, %v1587, %v1589
    %v1600 = vsel %vm86, %v1591, %v1593
    %v1601 = vsel %vm86, %v1595, %v1597
    %1606 = vrot.lane.b32.xlu0 %v1569, 30
    %v1607 = vpop.permute.xlu0 %1606
    %1608 = vrot.lane.b32.xlu0 %v1573, 30
    %v1609 = vpop.permute.xlu0 %1608
    %vm1610 = vcmask 244736
    %v1611 = vsel %vm1610, %v1607, %v1609
    %v1614 = vsel %vm86, %v1555, 0
    %1616 = vmatprep.subr.mxu0 0.0
    %1617 = vmatpush1.msra.mxu0 %v1598
    %1618 = vmatprep.subr.mxu0 0.0
    %1619 = vmatpush1.msra.mxu0 %v1599
    %1620 = vmatprep.subr.mxu0 0.0
    %1621 = vmatpush1.msra.mxu0 %v1600
    %1622 = vmatprep.subr.mxu0 0.0
    %1623 = vmatpush1.msra.mxu0 %v1601
    %1624 = vmatprep.subr.mxu0 0.0
    %1625 = vmatpush1.msra.mxu0 0.0
    %1626 = vmatprep.subr.mxu0 0.0
    %1627 = vmatpush1.msra.mxu0 0.0
    %1628 = vmatprep.subr.mxu0 0.0
    %1629 = vmatpush1.msra.mxu0 0.0
    %1630 = vmatprep.subr.mxu0 0.0
    %1631 = vmatpush1.msra.mxu0 0.0
    %1632 = vmatprep.subr.mxu0 0.0
    %1633 = vmatpush1.msra.mxu0 0.0
    %1634 = vmatprep.subr.mxu0 0.0
    %1635 = vmatpush1.msra.mxu0 0.0
    %1636 = vmatprep.subr.mxu0 0.0
    %1637 = vmatpush1.msra.mxu0 0.0
    %1638 = vmatprep.subr.mxu0 0.0
    %1639 = vmatpush1.msra.mxu0 0.0
    %1640 = vmatprep.subr.mxu0 0.0
    %1641 = vmatpush1.msra.mxu0 0.0
    %1642 = vmatprep.subr.mxu0 0.0
    %1643 = vmatpush1.msra.mxu0 0.0
    %1644 = vmatprep.subr.mxu0 0.0
    %1645 = vmatpush1.msra.mxu0 0.0
    %1646 = vmatprep.subr.mxu0 0.0
    %1647 = vmatpush1.msra.mxu0 0.0
    %1648 = vmatprep.subr.mxu0 0.0
    %1649 = vmatpush1.msra.mxu0 0.0
    %1650 = vmatprep.subr.mxu0 0.0
    %1651 = vmatpush1.msra.mxu0 0.0
    %1652 = vmatprep.subr.mxu0 0.0
    %1653 = vmatpush1.msra.mxu0 0.0
    %1654 = vmatprep.subr.mxu0 0.0
    %1655 = vmatpush1.msra.mxu0 0.0
    %1656 = vmatprep.subr.mxu0 0.0
    %1657 = vmatpush1.msra.mxu0 0.0
    %1658 = vmatprep.subr.mxu0 0.0
    %1659 = vmatpush1.msra.mxu0 0.0
    %1660 = vmatprep.subr.mxu0 0.0
    %1661 = vmatpush1.msra.mxu0 0.0
    %1662 = vmatprep.subr.mxu0 0.0
    %1663 = vmatpush1.msra.mxu0 0.0
    %1664 = vmatprep.subr.mxu0 0.0
    %1665 = vmatpush1.msra.mxu0 0.0
    %1666 = vmatprep.subr.mxu0 0.0
    %1667 = vmatpush1.msra.mxu0 0.0
    %1668 = vmatprep.subr.mxu0 0.0
    %1669 = vmatpush1.msra.mxu0 0.0
    %1670 = vmatprep.subr.mxu0 0.0
    %1671 = vmatpush1.msra.mxu0 0.0
    %1672 = vmatprep.subr.mxu0 0.0
    %1673 = vmatpush1.msra.mxu0 0.0
    %1674 = vmatprep.subr.mxu0 0.0
    %1675 = vmatpush1.msra.mxu0 0.0
    %1676 = vmatprep.subr.mxu0 0.0
    %1677 = vmatpush1.msra.mxu0 0.0
    %1678 = vmatprep.subr.mxu0 0.0
    %1679 = vmatpush1.msra.mxu0 0.0
    %1680 = vmatprep.mubr.f32.mxu0 0.0
    %1681 = vmatmul.mubr.f32.gmra.mrb[0].mxu0 %v1614
    %v1682 = vpop.f32.mrb[0].mxu0
    %v1683 = vadd.f32 %v1611, %v1682
    %v1684 = vpop.f32.mrb[0].mxu0
    %1685 = vdwg.mxu0
    %1687 = vrot.lane.b32.xlu0 %v1683, 32
    %v1688 = vpop.permute.xlu0 %1687
    %v1690 = vadd.f32 %v159, %v1688
    %v1691 = vxor.u32 %v1690, 2147483648
    %v1692 = vmul.f32 %v1691, 1.442695
    %v1693 = vpow.pop %v1692
    %v1694 = vadd.f32 %v1693, 1.0
    %v1695 = vrcp.pop %v1694
    %v1696 = vmul.f32 1.0, %v1695
    %1697 = vrot.lane.b32.xlu0 %v1683, 96
    %v1698 = vpop.permute.xlu0 %1697
    %v1700 = vmul.f32 %v1696, %v1698
    %1702 = vrot.lane.b32.xlu0 %v1700, 64
    %v1703 = vpop.permute.xlu0 %1702
    %v1705 = vadd.f32 %v159, %v1703
    %v1706 = vtanh.pop %v1705
    %v1707 = vsub.f32 1.0, %v1696
    %1709 = vrot.lane.b32.xlu0 %v1706, 96
    %v1710 = vpop.permute.xlu0 %1709
    %v1712 = vmul.f32 %v1707, %v1710
    %1713 = vrot.lane.b32.xlu0 %v1555, 64
    %v1714 = vpop.permute.xlu0 %1713
    %v1716 = vmul.f32 %v1696, %v1714
    %v1717 = vadd.f32 %v1712, %v1716
    %1719 = vrot.lane.b32.xlu0 %v1717, 64
    %v1720 = vpop.permute.xlu0 %1719
    %1722 = vst.msk [vmem:[#allocation5] sm:$0xff] %vm86, %v1720
    %v1723 = vld [vmem:[#allocation2 + $0x28] sm:$0xff]
    %v1724 = vld [vmem:[#allocation2 + $0x60] sm:$0xff]
    %v1725 = vld [vmem:[#allocation2 + $0x98] sm:$0xff]
    %v1726 = vld [vmem:[#allocation2 + $0xd0] sm:$0xff]
    %v1727 = vld [vmem:[%s10 + $0x5] sm:$0x1]
    %v1729 = vlaneseq
    %v1730 = vshrl.u32 %v1729, 7
    %v1731 = vsub.s32 0, %v1730
    %v1732 = vrot.slane %v1727, %v1731
    %1737 = vrot.lane.b32.xlu0 %v1723, 64
    %v1738 = vpop.permute.xlu0 %1737
    %1739 = vrot.lane.b32.xlu0 %v1724, 64
    %v1740 = vpop.permute.xlu0 %1739
    %1741 = vrot.lane.b32.xlu0 %v1725, 64
    %v1742 = vpop.permute.xlu0 %1741
    %1743 = vrot.lane.b32.xlu0 %v1726, 64
    %v1744 = vpop.permute.xlu0 %1743
    %1749 = vrot.lane.b32.xlu0 %v1732, 62
    %v1750 = vpop.permute.xlu0 %1749
    %v1752 = vsel %vm86, %v256, 0
    %1754 = vmatprep.subr.mxu0 0.0
    %1755 = vmatpush1.msra.mxu0 %v1738
    %1756 = vmatprep.subr.mxu0 0.0
    %1757 = vmatpush1.msra.mxu0 %v1740
    %1758 = vmatprep.subr.mxu0 0.0
    %1759 = vmatpush1.msra.mxu0 %v1742
    %1760 = vmatprep.subr.mxu0 0.0
    %1761 = vmatpush1.msra.mxu0 %v1744
    %1762 = vmatprep.subr.mxu0 0.0
    %1763 = vmatpush1.msra.mxu0 0.0
    %1764 = vmatprep.subr.mxu0 0.0
    %1765 = vmatpush1.msra.mxu0 0.0
    %1766 = vmatprep.subr.mxu0 0.0
    %1767 = vmatpush1.msra.mxu0 0.0
    %1768 = vmatprep.subr.mxu0 0.0
    %1769 = vmatpush1.msra.mxu0 0.0
    %1770 = vmatprep.subr.mxu0 0.0
    %1771 = vmatpush1.msra.mxu0 0.0
    %1772 = vmatprep.subr.mxu0 0.0
    %1773 = vmatpush1.msra.mxu0 0.0
    %1774 = vmatprep.subr.mxu0 0.0
    %1775 = vmatpush1.msra.mxu0 0.0
    %1776 = vmatprep.subr.mxu0 0.0
    %1777 = vmatpush1.msra.mxu0 0.0
    %1778 = vmatprep.subr.mxu0 0.0
    %1779 = vmatpush1.msra.mxu0 0.0
    %1780 = vmatprep.subr.mxu0 0.0
    %1781 = vmatpush1.msra.mxu0 0.0
    %1782 = vmatprep.subr.mxu0 0.0
    %1783 = vmatpush1.msra.mxu0 0.0
    %1784 = vmatprep.subr.mxu0 0.0
    %1785 = vmatpush1.msra.mxu0 0.0
    %1786 = vmatprep.subr.mxu0 0.0
    %1787 = vmatpush1.msra.mxu0 0.0
    %1788 = vmatprep.subr.mxu0 0.0
    %1789 = vmatpush1.msra.mxu0 0.0
    %1790 = vmatprep.subr.mxu0 0.0
    %1791 = vmatpush1.msra.mxu0 0.0
    %1792 = vmatprep.subr.mxu0 0.0
    %1793 = vmatpush1.msra.mxu0 0.0
    %1794 = vmatprep.subr.mxu0 0.0
    %1795 = vmatpush1.msra.mxu0 0.0
    %1796 = vmatprep.subr.mxu0 0.0
    %1797 = vmatpush1.msra.mxu0 0.0
    %1798 = vmatprep.subr.mxu0 0.0
    %1799 = vmatpush1.msra.mxu0 0.0
    %1800 = vmatprep.subr.mxu0 0.0
    %1801 = vmatpush1.msra.mxu0 0.0
    %1802 = vmatprep.subr.mxu0 0.0
    %1803 = vmatpush1.msra.mxu0 0.0
    %1804 = vmatprep.subr.mxu0 0.0
    %1805 = vmatpush1.msra.mxu0 0.0
    %1806 = vmatprep.subr.mxu0 0.0
    %1807 = vmatpush1.msra.mxu0 0.0
    %1808 = vmatprep.subr.mxu0 0.0
    %1809 = vmatpush1.msra.mxu0 0.0
    %1810 = vmatprep.subr.mxu0 0.0
    %1811 = vmatpush1.msra.mxu0 0.0
    %1812 = vmatprep.subr.mxu0 0.0
    %1813 = vmatpush1.msra.mxu0 0.0
    %1814 = vmatprep.subr.mxu0 0.0
    %1815 = vmatpush1.msra.mxu0 0.0
    %1816 = vmatprep.subr.mxu0 0.0
    %1817 = vmatpush1.msra.mxu0 0.0
    %1818 = vmatprep.mubr.f32.mxu0 0.0
    %1819 = vmatmul.mubr.f32.gmra.mrb[0].mxu0 %v1752
    %v1820 = vpop.f32.mrb[0].mxu0
    %v1821 = vadd.f32 %v1750, %v1820
    %v1822 = vpop.f32.mrb[0].mxu0
    %1823 = vdwg.mxu0
    %1824 = vrot.lane.b32.xlu0 %v1723, 32
    %v1825 = vpop.permute.xlu0 %1824
    %1826 = vrot.lane.b32.xlu0 %v1724, 32
    %v1827 = vpop.permute.xlu0 %1826
    %1828 = vrot.lane.b32.xlu0 %v1725, 32
    %v1829 = vpop.permute.xlu0 %1828
    %1830 = vrot.lane.b32.xlu0 %v1726, 32
    %v1831 = vpop.permute.xlu0 %1830
    %v1837 = vsel %vm86, %v1005, 0
    %1839 = vmatprep.subr.mxu0 0.0
    %1840 = vmatpush1.msra.mxu0 %v1825
    %1841 = vmatprep.subr.mxu0 0.0
    %1842 = vmatpush1.msra.mxu0 %v1827
    %1843 = vmatprep.subr.mxu0 0.0
    %1844 = vmatpush1.msra.mxu0 %v1829
    %1845 = vmatprep.subr.mxu0 0.0
    %1846 = vmatpush1.msra.mxu0 %v1831
    %1847 = vmatprep.subr.mxu0 0.0
    %1848 = vmatpush1.msra.mxu0 0.0
    %1849 = vmatprep.subr.mxu0 0.0
    %1850 = vmatpush1.msra.mxu0 0.0
    %1851 = vmatprep.subr.mxu0 0.0
    %1852 = vmatpush1.msra.mxu0 0.0
    %1853 = vmatprep.subr.mxu0 0.0
    %1854 = vmatpush1.msra.mxu0 0.0
    %1855 = vmatprep.subr.mxu0 0.0
    %1856 = vmatpush1.msra.mxu0 0.0
    %1857 = vmatprep.subr.mxu0 0.0
    %1858 = vmatpush1.msra.mxu0 0.0
    %1859 = vmatprep.subr.mxu0 0.0
    %1860 = vmatpush1.msra.mxu0 0.0
    %1861 = vmatprep.subr.mxu0 0.0
    %1862 = vmatpush1.msra.mxu0 0.0
    %1863 = vmatprep.subr.mxu0 0.0
    %1864 = vmatpush1.msra.mxu0 0.0
    %1865 = vmatprep.subr.mxu0 0.0
    %1866 = vmatpush1.msra.mxu0 0.0
    %1867 = vmatprep.subr.mxu0 0.0
    %1868 = vmatpush1.msra.mxu0 0.0
    %1869 = vmatprep.subr.mxu0 0.0
    %1870 = vmatpush1.msra.mxu0 0.0
    %1871 = vmatprep.subr.mxu0 0.0
    %1872 = vmatpush1.msra.mxu0 0.0
    %1873 = vmatprep.subr.mxu0 0.0
    %1874 = vmatpush1.msra.mxu0 0.0
    %1875 = vmatprep.subr.mxu0 0.0
    %1876 = vmatpush1.msra.mxu0 0.0
    %1877 = vmatprep.subr.mxu0 0.0
    %1878 = vmatpush1.msra.mxu0 0.0
    %1879 = vmatprep.subr.mxu0 0.0
    %1880 = vmatpush1.msra.mxu0 0.0
    %1881 = vmatprep.subr.mxu0 0.0
    %1882 = vmatpush1.msra.mxu0 0.0
    %1883 = vmatprep.subr.mxu0 0.0
    %1884 = vmatpush1.msra.mxu0 0.0
    %1885 = vmatprep.subr.mxu0 0.0
    %1886 = vmatpush1.msra.mxu0 0.0
    %1887 = vmatprep.subr.mxu0 0.0
    %1888 = vmatpush1.msra.mxu0 0.0
    %1889 = vmatprep.subr.mxu0 0.0
    %1890 = vmatpush1.msra.mxu0 0.0
    %1891 = vmatprep.subr.mxu0 0.0
    %1892 = vmatpush1.msra.mxu0 0.0
    %1893 = vmatprep.subr.mxu0 0.0
    %1894 = vmatpush1.msra.mxu0 0.0
    %1895 = vmatprep.subr.mxu0 0.0
    %1896 = vmatpush1.msra.mxu0 0.0
    %1897 = vmatprep.subr.mxu0 0.0
    %1898 = vmatpush1.msra.mxu0 0.0
    %1899 = vmatprep.subr.mxu0 0.0
    %1900 = vmatpush1.msra.mxu0 0.0
    %1901 = vmatprep.subr.mxu0 0.0
    %1902 = vmatpush1.msra.mxu0 0.0
    %1903 = vmatprep.mubr.f32.mxu0 0.0
    %1904 = vmatmul.mubr.f32.gmra.mrb[0].mxu0 %v1837
    %v1905 = vpop.f32.mrb[0].mxu0
    %v1906 = vadd.f32 0.0, %v1905
    %v1907 = vpop.f32.mrb[0].mxu0
    %1908 = vdwg.mxu0
    %v1909 = vadd.f32 %v1821, %v1906
    %v1910 = vld [vmem:[%s10 + $0x5] sm:$0x3]
    %v1912 = vlaneseq
    %v1913 = vshrl.u32 %v1912, 7
    %v1914 = vsub.s32 0, %v1913
    %v1915 = vrot.slane %v1910, %v1914
    %v1916 = vlaneseq
    %v1917 = vshrl.u32 %v1916, 7
    %v1918 = vsub.s32 1, %v1917
    %v1919 = vrot.slane %v1910, %v1918
    %1920 = vrot.lane.b32.xlu0 %v1915, 30
    %v1921 = vpop.permute.xlu0 %1920
    %1922 = vrot.lane.b32.xlu0 %v1919, 30
    %v1923 = vpop.permute.xlu0 %1922
    %v1924 = vsel %vm1610, %v1921, %v1923
    %v1926 = vadd.f32 %v1909, %v1924
    %v1927 = vxor.u32 %v1926, 2147483648
    %v1928 = vmul.f32 %v1927, 1.442695
    %v1929 = vpow.pop %v1928
    %v1930 = vadd.f32 %v1929, 1.0
    %v1931 = vrcp.pop %v1930
    %v1932 = vmul.f32 1.0, %v1931
    %v1933 = vmul.f32 %v1932, %v1005
    %v1934 = vsub.f32 1.0, %v1932
    %v1935 = vmul.f32 %v1934, %v256
    %v1936 = vadd.f32 %v1933, %v1935
    %v1937 = vld [vmem:[#allocation2 + $0x30] sm:$0xff]
    %v1938 = vld [vmem:[#allocation2 + $0x68] sm:$0xff]
    %v1939 = vld [vmem:[#allocation2 + $0xa0] sm:$0xff]
    %v1940 = vld [vmem:[#allocation2 + $0xd8] sm:$0xff]
    %v1941 = vld [vmem:[%s10 + $0x6] sm:$0x1]
    %v1943 = vlaneseq
    %v1944 = vshrl.u32 %v1943, 7
    %v1945 = vsub.s32 0, %v1944
    %v1946 = vrot.slane %v1941, %v1945
    %1947 = vrot.lane.b32.xlu0 %v1946, 126
    %v1948 = vpop.permute.xlu0 %1947
    %v1951 = vsel %vm86, %v1936, 0
    %1953 = vmatprep.subr.mxu0 0.0
    %1954 = vmatpush1.msra.mxu0 %v1937
    %1955 = vmatprep.subr.mxu0 0.0
    %1956 = vmatpush1.msra.mxu0 %v1938
    %1957 = vmatprep.subr.mxu0 0.0
    %1958 = vmatpush1.msra.mxu0 %v1939
    %1959 = vmatprep.subr.mxu0 0.0
    %1960 = vmatpush1.msra.mxu0 %v1940
    %1961 = vmatprep.subr.mxu0 0.0
    %1962 = vmatpush1.msra.mxu0 0.0
    %1963 = vmatprep.subr.mxu0 0.0
    %1964 = vmatpush1.msra.mxu0 0.0
    %1965 = vmatprep.subr.mxu0 0.0
    %1966 = vmatpush1.msra.mxu0 0.0
    %1967 = vmatprep.subr.mxu0 0.0
    %1968 = vmatpush1.msra.mxu0 0.0
    %1969 = vmatprep.subr.mxu0 0.0
    %1970 = vmatpush1.msra.mxu0 0.0
    %1971 = vmatprep.subr.mxu0 0.0
    %1972 = vmatpush1.msra.mxu0 0.0
    %1973 = vmatprep.subr.mxu0 0.0
    %1974 = vmatpush1.msra.mxu0 0.0
    %1975 = vmatprep.subr.mxu0 0.0
    %1976 = vmatpush1.msra.mxu0 0.0
    %1977 = vmatprep.subr.mxu0 0.0
    %1978 = vmatpush1.msra.mxu0 0.0
    %1979 = vmatprep.subr.mxu0 0.0
    %1980 = vmatpush1.msra.mxu0 0.0
    %1981 = vmatprep.subr.mxu0 0.0
    %1982 = vmatpush1.msra.mxu0 0.0
    %1983 = vmatprep.subr.mxu0 0.0
    %1984 = vmatpush1.msra.mxu0 0.0
    %1985 = vmatprep.subr.mxu0 0.0
    %1986 = vmatpush1.msra.mxu0 0.0
    %1987 = vmatprep.subr.mxu0 0.0
    %1988 = vmatpush1.msra.mxu0 0.0
    %1989 = vmatprep.subr.mxu0 0.0
    %1990 = vmatpush1.msra.mxu0 0.0
    %1991 = vmatprep.subr.mxu0 0.0
    %1992 = vmatpush1.msra.mxu0 0.0
    %1993 = vmatprep.subr.mxu0 0.0
    %1994 = vmatpush1.msra.mxu0 0.0
    %1995 = vmatprep.subr.mxu0 0.0
    %1996 = vmatpush1.msra.mxu0 0.0
    %1997 = vmatprep.subr.mxu0 0.0
    %1998 = vmatpush1.msra.mxu0 0.0
    %1999 = vmatprep.subr.mxu0 0.0
    %2000 = vmatpush1.msra.mxu0 0.0
    %2001 = vmatprep.subr.mxu0 0.0
    %2002 = vmatpush1.msra.mxu0 0.0
    %2003 = vmatprep.subr.mxu0 0.0
    %2004 = vmatpush1.msra.mxu0 0.0
    %2005 = vmatprep.subr.mxu0 0.0
    %2006 = vmatpush1.msra.mxu0 0.0
    %2007 = vmatprep.subr.mxu0 0.0
    %2008 = vmatpush1.msra.mxu0 0.0
    %2009 = vmatprep.subr.mxu0 0.0
    %2010 = vmatpush1.msra.mxu0 0.0
    %2011 = vmatprep.subr.mxu0 0.0
    %2012 = vmatpush1.msra.mxu0 0.0
    %2013 = vmatprep.subr.mxu0 0.0
    %2014 = vmatpush1.msra.mxu0 0.0
    %2015 = vmatprep.subr.mxu0 0.0
    %2016 = vmatpush1.msra.mxu0 0.0
    %2017 = vmatprep.mubr.f32.mxu0 0.0
    %2018 = vmatmul.mubr.f32.gmra.mrb[0].mxu0 %v1951
    %v2019 = vpop.f32.mrb[0].mxu0
    %v2020 = vadd.f32 %v1948, %v2019
    %v2021 = vpop.f32.mrb[0].mxu0
    %2022 = vdwg.mxu0
    %v2023 = vadd.f32 %v254, %v2020
    %v2024 = vxor.u32 %v2023, 2147483648
    %v2025 = vmul.f32 %v2024, 1.442695
    %v2026 = vpow.pop %v2025
    %v2027 = vadd.f32 %v2026, 1.0
    %v2028 = vrcp.pop %v2027
    %v2029 = vmul.f32 1.0, %v2028
    %2031 = vrot.lane.b32.xlu0 %v2020, 64
    %v2032 = vpop.permute.xlu0 %2031
    %v2034 = vmul.f32 %v2029, %v2032
    %2036 = vrot.lane.b32.xlu0 %v2034, 64
    %v2037 = vpop.permute.xlu0 %2036
    %v2039 = vadd.f32 %v254, %v2037
    %v2040 = vtanh.pop %v2039
    %v2041 = vsub.f32 1.0, %v2029
    %2043 = vrot.lane.b32.xlu0 %v2040, 96
    %v2044 = vpop.permute.xlu0 %2043
    %v2046 = vmul.f32 %v2041, %v2044
    %2047 = vrot.lane.b32.xlu0 %v1936, 32
    %v2048 = vpop.permute.xlu0 %2047
    %v2050 = vmul.f32 %v2029, %v2048
    %v2051 = vadd.f32 %v2046, %v2050
    %2053 = vrot.lane.b32.xlu0 %v2051, 96
    %v2054 = vpop.permute.xlu0 %2053
    %vm2056 = vcmask 254976
    %2057 = vst.msk [vmem:[#allocation6] sm:$0x3] %vm2056, %v2054
    // Predicated region
    $region50: #{sconv1_forward.1} parent=1 // pred_check
      _
    $region51: #{sconv1_forward.1} parent=1 // pred_check_branch
      %2059 = sbr.rel (0) target = $region53
    $region52: #{sconv1_forward.1} parent=1 // pred_region
      %s2061 = ssub.s32 128, 128
      %2062 = vsyncadd [#allocation4], %s2061
      %s2064 = sshll.u32 [#allocation5], 4
      %s2065 = int_to_ptr.vmem [resolvable:$true] %s2064
      %2067 = dma.vmem_to_hbm [thread:$0]  %s2065, 128, %s11, [#allocation4]
    $region53: #{sconv1_forward.1} parent=1 // pred_fallthru
      _
    // Predicated region
    $region54: #{sconv1_forward.1} parent=1 // pred_check
      _
    $region55: #{sconv1_forward.1} parent=1 // pred_check_branch
      %2069 = sbr.rel (0) target = $region57
    $region56: #{sconv1_forward.1} parent=1 // pred_region
      %s2071 = ssub.s32 32, 32
      %2072 = vsyncadd [#allocation7], %s2071
      %s2074 = sshll.u32 [#allocation6], 4
      %s2075 = int_to_ptr.vmem [resolvable:$true] %s2074
      %2077 = dma.vmem_to_hbm [thread:$0]  %s2075, 32, %s12, [#allocation7]
    $region57: #{sconv1_forward.1} parent=1 // pred_fallthru
      _
    // Predicated region
    $region58: #{sconv1_forward.1} parent=1 // pred_check
      _
    $region59: #{sconv1_forward.1} parent=1 // pred_check_branch
      %2079 = sbr.rel (0) target = $region61
    $region60: #{sconv1_forward.1} parent=1 // pred_region
      %2080 = dma.done [#allocation4], 128
    $region61: #{sconv1_forward.1} parent=1 // pred_fallthru
      _
    // Predicated region
    $region62: #{sconv1_forward.1} parent=1 // pred_check
      _
    $region63: #{sconv1_forward.1} parent=1 // pred_check_branch
      %2082 = sbr.rel (0) target = $region65
    $region64: #{sconv1_forward.1} parent=1 // pred_region
      %2083 = dma.done [#allocation7], 32
    $region65: #{sconv1_forward.1} parent=1 // pred_fallthru
      _
    %2084 = vsyncpa [#allocation3], 1
    %2085 = vsyncpa [#allocation4], 1
    %2086 = vsyncpa [#allocation7], 1

</llo_original>
